<compile_context>
chip_gen: v7x
topology: tpu7x:2x2x1
jax: 0.10.0
libtpu: 0.0.40
codegen_flags: <defaults>
</compile_context>

<pallas_src>
import functools

import jax
import jax.numpy as jnp
from jax import lax
from jax.experimental import pallas as pl
from jax.experimental.pallas import tpu as pltpu

LANE = 128
NEG = -1e9  # bias padding for unused logit columns (exp(NEG - max) == 0)


def _round_up(n, m):
    return ((n + m - 1) // m) * m


# --------------------------------------------------------------------------
# Single fused kernel: BiLSTM recurrence + both output heads + masked CE.
# Time-major, batch padded to Bp sublanes, label dims padded to 128 lanes.
# Everything lives in VMEM for one grid step (grid=(1,)).
#
# Gate column layout (gate-type-major, width H each):
#   [ i_f, i_b, f_f, f_b, o_f, o_b, g_f, g_b ]
# Carry layout: h_cat / c_cat = (Bp, 2H) = [ fwd | bwd ].
# gates_scr row block s holds forward pre-gates for time s AND backward
# pre-gates for time T-1-s (x_cat was built that way on the host).
# --------------------------------------------------------------------------
def _bilstm_mtl_kernel(T, B, H, Lp,
                       x_ref, wih_ref, whh_ref, b_ref,
                       whf_ref, whb_ref, bh_ref,
                       lt_ref, vt_ref, lk_ref, vk_ref,
                       logits_ref, loss_ref,
                       gates_scr, hid_f_scr, hid_b_scr):
    # ---- time-parallel: fused input->gate projection (one matmul, both dirs)
    gates_scr[...] = (jnp.dot(x_ref[...], wih_ref[...],
                              preferred_element_type=jnp.float32)
                      + b_ref[...])                           # (T*B, 8H)

    whh = whh_ref[...]            # (2H, 8H), block-diagonal, gate-type-major

    def body(s, carry):
        h_cat, c_cat = carry                                  # (B, 2H) each
        off_f = pl.multiple_of(s * B, B)
        gates = gates_scr[pl.ds(off_f, B), :] + jnp.dot(
            h_cat, whh, preferred_element_type=jnp.float32)   # (B, 8H)
        sg = jax.nn.sigmoid(gates[:, 0:6 * H])                # one EUP push (i,f,o)
        i = sg[:, 0:2 * H]
        f = sg[:, 2 * H:4 * H]
        o = sg[:, 4 * H:6 * H]
        g = jnp.tanh(gates[:, 6 * H:8 * H])                   # one EUP push
        c_new = f * c_cat + i * g
        h_new = o * jnp.tanh(c_new)
        # forward half belongs to time s, backward half to time T-1-s
        hid_f_scr[pl.ds(off_f, B), :] = h_new[:, 0:H]
        off_b = pl.multiple_of((T - 1 - s) * B, B)
        hid_b_scr[pl.ds(off_b, B), :] = h_new[:, H:2 * H]
        return h_new, c_new

    zero = jnp.zeros((B, 2 * H), jnp.float32)
    lax.fori_loop(0, T, body, (zero, zero), unroll=True)

    # ---- time-parallel: fused heads, N = Lp + Cp = 256 fills one MXU pass
    head = (jnp.dot(hid_f_scr[...], whf_ref[...], preferred_element_type=jnp.float32)
            + jnp.dot(hid_b_scr[...], whb_ref[...], preferred_element_type=jnp.float32)
            + bh_ref[...])                                    # (T*B, Lp+Cp)
    tag_logits = head[:, :Lp]                                 # lane-aligned slice
    tok_logits = head[:, Lp:]
    logits_ref[...] = tag_logits                              # unmasked lane-dense store

    def masked_ce(logits, labels, valid):
        # padded logit columns carry bias NEG so they vanish from the logsumexp;
        # invalid rows (mask==0 or label==ignore_index 0) have valid==0.
        m = jnp.max(logits, axis=-1, keepdims=True)
        lse = m + jnp.log(jnp.sum(jnp.exp(logits - m), axis=-1, keepdims=True))
        cols = lax.broadcasted_iota(jnp.int32, logits.shape, 1)
        picked = jnp.sum(jnp.where(cols == labels, logits, 0.0),
                         axis=-1, keepdims=True)
        per_row = valid * (lse - picked)                      # (T*B, 1)
        return (jnp.sum(per_row, axis=0, keepdims=True),
                jnp.sum(valid, axis=0, keepdims=True))

    s_tag, c_tag = masked_ce(tag_logits, lt_ref[...], vt_ref[...])
    s_tok, c_tok = masked_ce(tok_logits, lk_ref[...], vk_ref[...])
    # NOTE: matches PyTorch CrossEntropyLoss semantics (NaN if zero valid targets).
    loss_ref[...] = s_tag / c_tag + s_tok / c_tok


def bilstm_mtl_pallas(x_cat, wih, whh, b, whead_f, whead_b, bhead,
                      lbl_tag, v_tag, lbl_tok, v_tok, T, Bp, H, Lp, Cp):
    TB, E2 = x_cat.shape
    kernel = functools.partial(_bilstm_mtl_kernel, T, Bp, H, Lp)

    def spec(shape):
        return pl.BlockSpec(shape, lambda i, _n=len(shape): (0,) * _n)

    logits, loss = pl.pallas_call(
        kernel,
        out_shape=(jax.ShapeDtypeStruct((TB, Lp), jnp.float32),
                   jax.ShapeDtypeStruct((1, 1), jnp.float32)),
        grid_spec=pltpu.PrefetchScalarGridSpec(
            num_scalar_prefetch=0,
            grid=(1,),
            in_specs=[
                spec((TB, E2)),
                spec((E2, 8 * H)), spec((2 * H, 8 * H)), spec((1, 8 * H)),
                spec((H, Lp + Cp)), spec((H, Lp + Cp)), spec((1, Lp + Cp)),
                spec((TB, 1)), spec((TB, 1)), spec((TB, 1)), spec((TB, 1)),
            ],
            out_specs=[spec((TB, Lp)), spec((1, 1))],
            scratch_shapes=[pltpu.VMEM((TB, 8 * H), jnp.float32),
                            pltpu.VMEM((TB, H), jnp.float32),
                            pltpu.VMEM((TB, H), jnp.float32)],
        ),
        compiler_params=pltpu.CompilerParams(
            dimension_semantics=("arbitrary",),
            vmem_limit_bytes=32 * 1024 * 1024),
    )(x_cat, wih, whh, b, whead_f, whead_b, bhead,
      lbl_tag, v_tag, lbl_tok, v_tok)
    return logits, loss


# --------------------------------------------------------------------------
# Host-side parameter packing: gate-type-major column order, block-diagonal
# fused weights, padded/fused head weights.
# --------------------------------------------------------------------------
def _split_gates(w, H):
    # PyTorch LSTM order along the last axis: i, f, g, o
    return w[:, 0:H], w[:, H:2 * H], w[:, 2 * H:3 * H], w[:, 3 * H:4 * H]


def _pack_params(params, H, E, L, C, Lp, Cp):
    i_f, f_f, g_f, o_f = _split_gates(params['wih_f'], H)
    i_b, f_b, g_b, o_b = _split_gates(params['wih_b'], H)
    zE = jnp.zeros((E, H), jnp.float32)
    # rows [0:E] see x[t] (forward), rows [E:2E] see x[T-1-t] (backward)
    wih = jnp.concatenate([
        jnp.concatenate([i_f, zE, f_f, zE, o_f, zE, g_f, zE], axis=1),
        jnp.concatenate([zE, i_b, zE, f_b, zE, o_b, zE, g_b], axis=1)],
        axis=0)                                               # (2E, 8H)

    hi_f, hf_f, hg_f, ho_f = _split_gates(params['whh_f'], H)
    hi_b, hf_b, hg_b, ho_b = _split_gates(params['whh_b'], H)
    zH = jnp.zeros((H, H), jnp.float32)
    whh = jnp.concatenate([
        jnp.concatenate([hi_f, zH, hf_f, zH, ho_f, zH, hg_f, zH], axis=1),
        jnp.concatenate([zH, hi_b, zH, hf_b, zH, ho_b, zH, hg_b], axis=1)],
        axis=0)                                               # (2H, 8H)

    bi_f, bf_f, bg_f, bo_f = _split_gates(params['b_f'], H)
    bi_b, bf_b, bg_b, bo_b = _split_gates(params['b_b'], H)
    b = jnp.concatenate([bi_f, bi_b, bf_f, bf_b, bo_f, bo_b, bg_f, bg_b],
                        axis=1)                               # (1, 8H)

    w_tag_f = jnp.pad(params['w_tag_f'], ((0, 0), (0, Lp - L)))
    w_tag_b = jnp.pad(params['w_tag_b'], ((0, 0), (0, Lp - L)))
    w_tok_f = jnp.pad(params['w_tok_f'], ((0, 0), (0, Cp - C)))
    w_tok_b = jnp.pad(params['w_tok_b'], ((0, 0), (0, Cp - C)))
    whead_f = jnp.concatenate([w_tag_f, w_tok_f], axis=1)     # (H, Lp+Cp)
    whead_b = jnp.concatenate([w_tag_b, w_tok_b], axis=1)     # (H, Lp+Cp)
    bhead = jnp.concatenate([
        jnp.pad(params['b_tag'], ((0, 0), (0, Lp - L)), constant_values=NEG),
        jnp.pad(params['b_tok'], ((0, 0), (0, Cp - C)), constant_values=NEG)],
        axis=1)                                               # (1, Lp+Cp)
    return wih, whh, b, whead_f, whead_b, bhead


# --------------------------------------------------------------------------
# Full forward (glue: embedding gather, mask, padding, label prep, transposes).
# --------------------------------------------------------------------------
def bilstm_crf_mtl_forward(params, word_input, input_mask, labels, labels_token):
    # word_input/input_mask/labels/labels_token: (B, T) int32
    B, T = word_input.shape
    E = params['wih_f'].shape[0]
    H = params['whh_f'].shape[0]
    L = params['b_tag'].shape[-1]
    C = params['b_tok'].shape[-1]
    Bp = _round_up(B, 8)          # pad batch to full sublanes
    Lp = _round_up(L, LANE)       # pad label dims to full lanes
    Cp = _round_up(C, LANE)

    emb = jnp.take(params['embedding'], word_input, axis=0)          # (B, T, E) gather (glue)
    mask_f = input_mask.astype(jnp.float32)                          # (B, T)
    x = emb.astype(jnp.float32) * mask_f[..., None]                  # masked embeddings
    x_tm = jnp.transpose(x, (1, 0, 2))                               # (T, B, E)
    x_tm = jnp.pad(x_tm, ((0, 0), (0, Bp - B), (0, 0)))              # (T, Bp, E)
    # x_cat row block t = [x[t] | x[T-1-t]] so forward(t) and backward(T-1-t)
    # pre-gates come from the same row block inside the kernel.
    x_cat = jnp.concatenate([x_tm, x_tm[::-1]], axis=-1).reshape(T * Bp, 2 * E)

    def prep(lbl):
        lbl_tm = jnp.transpose(lbl, (1, 0))                          # (T, B)
        valid = ((jnp.transpose(mask_f, (1, 0)) >= 1.0)
                 & (lbl_tm != 0)).astype(jnp.float32)
        lbl_p = jnp.pad(lbl_tm, ((0, 0), (0, Bp - B)))               # padded rows -> label 0
        val_p = jnp.pad(valid, ((0, 0), (0, Bp - B)))                # padded rows -> invalid
        return (lbl_p.reshape(T * Bp, 1).astype(jnp.int32),
                val_p.reshape(T * Bp, 1))

    lbl_tag, v_tag = prep(labels)
    lbl_tok, v_tok = prep(labels_token)

    wih, whh, b, whead_f, whead_b, bhead = _pack_params(params, H, E, L, C, Lp, Cp)

    logits_flat, loss = bilstm_mtl_pallas(
        x_cat, wih, whh, b, whead_f, whead_b, bhead,
        lbl_tag, v_tag, lbl_tok, v_tok, T, Bp, H, Lp, Cp)
    logits = logits_flat.reshape(T, Bp, Lp)[:, :B, :L]               # strip pads
    logits = jnp.transpose(logits, (1, 0, 2))                        # (B, T, L)
    return loss[0, 0], logits


# --------------------------------------------------------------------------
# Deterministic parameter init (shapes implied by the module __init__).
# Note: b_f / b_b are the folded sum of PyTorch's b_ih + b_hh.
# --------------------------------------------------------------------------
def init_params(key, vocab, E, H, L, C):
    ks = jax.random.split(key, 13)
    s = float(1.0 / (H ** 0.5))

    def u(k, shape, scale):
        return jax.random.uniform(k, shape, jnp.float32, -scale, scale)

    return dict(
        embedding=u(ks[0], (vocab, E), 0.5),
        wih_f=u(ks[1], (E, 4 * H), s), whh_f=u(ks[2], (H, 4 * H), s), b_f=u(ks[3], (1, 4 * H), s),
        wih_b=u(ks[4], (E, 4 * H), s), whh_b=u(ks[5], (H, 4 * H), s), b_b=u(ks[6], (1, 4 * H), s),
        w_tag_f=u(ks[7], (H, L), s), w_tag_b=u(ks[8], (H, L), s), b_tag=u(ks[9], (1, L), s),
        w_tok_f=u(ks[10], (H, C), s), w_tok_b=u(ks[11], (H, C), s), b_tok=u(ks[12], (1, C), s),
    )


# --------------------------------------------------------------------------
# Pure-JAX reference (lax.scan BiLSTM, highest matmul precision).
# --------------------------------------------------------------------------
def reference_forward(params, word_input, input_mask, labels, labels_token):
    B, T = word_input.shape
    H = params['whh_f'].shape[0]
    hp = jax.lax.Precision.HIGHEST
    emb = jnp.take(params['embedding'], word_input, axis=0)
    mask_f = input_mask.astype(jnp.float32)
    x_tm = jnp.transpose(emb * mask_f[..., None], (1, 0, 2)).astype(jnp.float32)

    def run_dir(xs, wih, whh, b):
        def step(carry, xt):
            h, c = carry
            gates = (jnp.dot(xt, wih, precision=hp)
                     + jnp.dot(h, whh, precision=hp) + b[0])
            i = jax.nn.sigmoid(gates[:, 0 * H:1 * H])
            f = jax.nn.sigmoid(gates[:, 1 * H:2 * H])
            g = jnp.tanh(gates[:, 2 * H:3 * H])
            o = jax.nn.sigmoid(gates[:, 3 * H:4 * H])
            c_new = f * c + i * g
            h_new = o * jnp.tanh(c_new)
            return (h_new, c_new), h_new
        init = (jnp.zeros((B, H), jnp.float32), jnp.zeros((B, H), jnp.float32))
        _, hs = lax.scan(step, init, xs)
        return hs

    hf = run_dir(x_tm, params['wih_f'], params['whh_f'], params['b_f'])
    hb = run_dir(x_tm[::-1], params['wih_b'], params['whh_b'], params['b_b'])[::-1]
    out = jnp.concatenate([hf, hb], axis=-1)                         # (T, B, 2H)
    w_tag = jnp.concatenate([params['w_tag_f'], params['w_tag_b']], axis=0)
    w_tok = jnp.concatenate([params['w_tok_f'], params['w_tok_b']], axis=0)
    logits_tag = jnp.dot(out, w_tag, precision=hp) + params['b_tag'][0]
    logits_tok = jnp.dot(out, w_tok, precision=hp) + params['b_tok'][0]

    def ce(logits, lbl_tm, valid):
        lse = jax.nn.logsumexp(logits, axis=-1)
        picked = jnp.take_along_axis(logits, lbl_tm[..., None], axis=-1)[..., 0]
        return jnp.sum((lse - picked) * valid) / jnp.sum(valid)

    lbl_tm = jnp.transpose(labels, (1, 0))
    tok_tm = jnp.transpose(labels_token, (1, 0))
    mask_tm = jnp.transpose(mask_f, (1, 0))
    v_tag = ((mask_tm >= 1.0) & (lbl_tm != 0)).astype(jnp.float32)
    v_tok = ((mask_tm >= 1.0) & (tok_tm != 0)).astype(jnp.float32)
    loss = ce(logits_tag, lbl_tm, v_tag) + ce(logits_tok, tok_tm, v_tok)
    return loss, jnp.transpose(logits_tag, (1, 0, 2))


if __name__ == "__main__":
    B, T, E, H = 2, 8, 32, 32
    VOCAB = 50
    L = 5            # label_size (use_crf=False -> no +2)
    C = 3            # num_token_label = 2 + use_multi_token_mtl(=1)

    key = jax.random.PRNGKey(0)
    kp, kw, kl, kt = jax.random.split(key, 4)
    params = init_params(kp, VOCAB, E, H, L, C)

    word_input = jax.random.randint(kw, (B, T), 0, VOCAB, dtype=jnp.int32)
    input_mask = jnp.ones((B, T), dtype=jnp.int32).at[:, -2:].set(0)
    labels = jax.random.randint(kl, (B, T), 0, L, dtype=jnp.int32).at[:, 0].set(1)
    labels_token = jax.random.randint(kt, (B, T), 0, C, dtype=jnp.int32).at[:, 1].set(1)

    loss, logits = bilstm_crf_mtl_forward(params, word_input, input_mask, labels, labels_token)
    jax.block_until_ready((loss, logits))

    ref_loss, ref_logits = reference_forward(params, word_input, input_mask, labels, labels_token)
    assert logits.shape == (B, T, L)
    assert jnp.allclose(loss, ref_loss, atol=5e-3, rtol=5e-3), (float(loss), float(ref_loss))
    assert jnp.allclose(logits, ref_logits, atol=5e-3, rtol=5e-3)

    print("KERNEL_OK")
</pallas_src>

<mosaic_0001>
module attributes {stable_mosaic.version = 11 : i64} {
  func.func @_bilstm_mtl_kernel(%arg0: i32, %arg1: memref<64x64xf32, #tpu.memory_space<vmem>>, %arg2: memref<64x256xf32, #tpu.memory_space<vmem>>, %arg3: memref<64x256xf32, #tpu.memory_space<vmem>>, %arg4: memref<1x256xf32, #tpu.memory_space<vmem>>, %arg5: memref<32x256xf32, #tpu.memory_space<vmem>>, %arg6: memref<32x256xf32, #tpu.memory_space<vmem>>, %arg7: memref<1x256xf32, #tpu.memory_space<vmem>>, %arg8: memref<64x1xi32, #tpu.memory_space<vmem>>, %arg9: memref<64x1xf32, #tpu.memory_space<vmem>>, %arg10: memref<64x1xi32, #tpu.memory_space<vmem>>, %arg11: memref<64x1xf32, #tpu.memory_space<vmem>>, %arg12: memref<64x128xf32, #tpu.memory_space<vmem>>, %arg13: memref<1x1xf32, #tpu.memory_space<vmem>>, %arg14: memref<64x256xf32, #tpu.memory_space<vmem>>, %arg15: memref<64x32xf32, #tpu.memory_space<vmem>>, %arg16: memref<64x32xf32, #tpu.memory_space<vmem>>) attributes {dimension_semantics = [#tpu.dimension_semantics<arbitrary>], iteration_bounds = array<i64: 1>, scalar_prefetch = 0 : i64, scratch_operands = 3 : i64, tpu.core_type = #tpu.core_type<tc>, window_params = [{pipeline_mode = #tpu.pipeline_mode<synchronous>, transform_indices = @transform_0, window_bounds = array<i64: 64, 64>}, {pipeline_mode = #tpu.pipeline_mode<synchronous>, transform_indices = @transform_1, window_bounds = array<i64: 64, 256>}, {pipeline_mode = #tpu.pipeline_mode<synchronous>, transform_indices = @transform_2, window_bounds = array<i64: 64, 256>}, {pipeline_mode = #tpu.pipeline_mode<synchronous>, transform_indices = @transform_3, window_bounds = array<i64: 1, 256>}, {pipeline_mode = #tpu.pipeline_mode<synchronous>, transform_indices = @transform_4, window_bounds = array<i64: 32, 256>}, {pipeline_mode = #tpu.pipeline_mode<synchronous>, transform_indices = @transform_5, window_bounds = array<i64: 32, 256>}, {pipeline_mode = #tpu.pipeline_mode<synchronous>, transform_indices = @transform_6, window_bounds = array<i64: 1, 256>}, {pipeline_mode = #tpu.pipeline_mode<synchronous>, transform_indices = @transform_7, window_bounds = array<i64: 64, 1>}, {pipeline_mode = #tpu.pipeline_mode<synchronous>, transform_indices = @transform_8, window_bounds = array<i64: 64, 1>}, {pipeline_mode = #tpu.pipeline_mode<synchronous>, transform_indices = @transform_9, window_bounds = array<i64: 64, 1>}, {pipeline_mode = #tpu.pipeline_mode<synchronous>, transform_indices = @transform_10, window_bounds = array<i64: 64, 1>}, {pipeline_mode = #tpu.pipeline_mode<synchronous>, transform_indices = @transform_11, window_bounds = array<i64: 64, 128>}, {pipeline_mode = #tpu.pipeline_mode<synchronous>, transform_indices = @transform_12, window_bounds = array<i64: 1, 1>}]} {
    %c0 = arith.constant 0 : index
    %c0_0 = arith.constant 0 : index
    %0 = vector.load %arg1[%c0, %c0_0] : memref<64x64xf32, #tpu.memory_space<vmem>>, vector<64x64xf32>
    %c0_1 = arith.constant 0 : index
    %c0_2 = arith.constant 0 : index
    %1 = vector.load %arg2[%c0_1, %c0_2] : memref<64x256xf32, #tpu.memory_space<vmem>>, vector<64x256xf32>
    %cst = arith.constant dense<0.000000e+00> : vector<64x256xf32>
    %2 = tpu.matmul %0, %1, %cst {dimension_numbers = #tpu.dot_dimension_numbers<[1], [0], [0], [1], [0, 0, 1, 1], [], []>} : vector<64x64xf32>, vector<64x256xf32>, vector<64x256xf32> -> vector<64x256xf32>
    %c0_3 = arith.constant 0 : index
    %c0_4 = arith.constant 0 : index
    %3 = vector.load %arg4[%c0_3, %c0_4] : memref<1x256xf32, #tpu.memory_space<vmem>>, vector<1x256xf32>
    %4 = vector.broadcast %3 : vector<1x256xf32> to vector<64x256xf32>
    %5 = arith.addf %2, %4 : vector<64x256xf32>
    %c0_5 = arith.constant 0 : index
    %c0_6 = arith.constant 0 : index
    %6 = vector.load %arg14[%c0_5, %c0_6] : memref<64x256xf32, #tpu.memory_space<vmem>>, vector<64x256xf32>
    tpu.vector_store %arg14[%c0_5, %c0_6], %5 {strides = array<i32>} : memref<64x256xf32, #tpu.memory_space<vmem>>, vector<64x256xf32>,
    %c0_7 = arith.constant 0 : index
    %c0_8 = arith.constant 0 : index
    %7 = vector.load %arg3[%c0_7, %c0_8] : memref<64x256xf32, #tpu.memory_space<vmem>>, vector<64x256xf32>
    %cst_9 = arith.constant 0.000000e+00 : f32
    %8 = vector.broadcast %cst_9 : f32 to vector<8x64xf32>
    %c0_i32 = arith.constant 0 : i32
    %c8_i32 = arith.constant 8 : i32
    %9 = arith.muli %c0_i32, %c8_i32 : i32
    %10 = tpu.assume_multiple %9, 8 : i32
    %11 = arith.index_cast %10 : i32 to index
    %c0_10 = arith.constant 0 : index
    %12 = vector.load %arg14[%11, %c0_10] : memref<64x256xf32, #tpu.memory_space<vmem>>, vector<8x256xf32>
    %cst_11 = arith.constant dense<0.000000e+00> : vector<8x256xf32>
    %13 = tpu.matmul %8, %7, %cst_11 {dimension_numbers = #tpu.dot_dimension_numbers<[1], [0], [0], [1], [0, 0, 1, 1], [], []>} : vector<8x64xf32>, vector<64x256xf32>, vector<8x256xf32> -> vector<8x256xf32>
    %14 = arith.addf %12, %13 : vector<8x256xf32>
    %15 = vector.extract_strided_slice %14 {offsets = [0, 0], sizes = [8, 192], strides = [1, 1]} : vector<8x256xf32> to vector<8x192xf32>
    %16 = arith.negf %15 : vector<8x192xf32>
    %17 = math.exp %16 : vector<8x192xf32>
    %cst_12 = arith.constant 1.000000e+00 : f32
    %18 = vector.broadcast %cst_12 : f32 to vector<8x192xf32>
    %19 = arith.addf %18, %17 : vector<8x192xf32>
    %20 = arith.divf %18, %19 : vector<8x192xf32>
    %21 = vector.extract_strided_slice %20 {offsets = [0, 0], sizes = [8, 64], strides = [1, 1]} : vector<8x192xf32> to vector<8x64xf32>
    %22 = vector.extract_strided_slice %20 {offsets = [0, 64], sizes = [8, 64], strides = [1, 1]} : vector<8x192xf32> to vector<8x64xf32>
    %23 = vector.extract_strided_slice %20 {offsets = [0, 128], sizes = [8, 64], strides = [1, 1]} : vector<8x192xf32> to vector<8x64xf32>
    %24 = vector.extract_strided_slice %14 {offsets = [0, 192], sizes = [8, 64], strides = [1, 1]} : vector<8x256xf32> to vector<8x64xf32>
    %25 = math.tanh %24 : vector<8x64xf32>
    %26 = arith.mulf %22, %8 : vector<8x64xf32>
    %27 = arith.mulf %21, %25 : vector<8x64xf32>
    %28 = arith.addf %26, %27 : vector<8x64xf32>
    %29 = math.tanh %28 : vector<8x64xf32>
    %30 = arith.mulf %23, %29 : vector<8x64xf32>
    %31 = vector.extract_strided_slice %30 {offsets = [0, 0], sizes = [8, 32], strides = [1, 1]} : vector<8x64xf32> to vector<8x32xf32>
    %32 = arith.index_cast %10 : i32 to index
    %c0_13 = arith.constant 0 : index
    %33 = vector.load %arg15[%32, %c0_13] : memref<64x32xf32, #tpu.memory_space<vmem>>, vector<8x32xf32>
    tpu.vector_store %arg15[%32, %c0_13], %31 {strides = array<i32>} : memref<64x32xf32, #tpu.memory_space<vmem>>, vector<8x32xf32>,
    %c7_i32 = arith.constant 7 : i32
    %34 = arith.subi %c7_i32, %c0_i32 : i32
    %c8_i32_14 = arith.constant 8 : i32
    %35 = arith.muli %34, %c8_i32_14 : i32
    %36 = tpu.assume_multiple %35, 8 : i32
    %37 = vector.extract_strided_slice %30 {offsets = [0, 32], sizes = [8, 32], strides = [1, 1]} : vector<8x64xf32> to vector<8x32xf32>
    %38 = arith.index_cast %36 : i32 to index
    %c0_15 = arith.constant 0 : index
    %39 = vector.load %arg16[%38, %c0_15] : memref<64x32xf32, #tpu.memory_space<vmem>>, vector<8x32xf32>
    tpu.vector_store %arg16[%38, %c0_15], %37 {strides = array<i32>} : memref<64x32xf32, #tpu.memory_space<vmem>>, vector<8x32xf32>,
    %c1_i32 = arith.constant 1 : i32
    %c8_i32_16 = arith.constant 8 : i32
    %40 = arith.muli %c1_i32, %c8_i32_16 : i32
    %41 = tpu.assume_multiple %40, 8 : i32
    %42 = arith.index_cast %41 : i32 to index
    %c0_17 = arith.constant 0 : index
    %43 = vector.load %arg14[%42, %c0_17] : memref<64x256xf32, #tpu.memory_space<vmem>>, vector<8x256xf32>
    %cst_18 = arith.constant dense<0.000000e+00> : vector<8x256xf32>
    %44 = tpu.matmul %30, %7, %cst_18 {dimension_numbers = #tpu.dot_dimension_numbers<[1], [0], [0], [1], [0, 0, 1, 1], [], []>} : vector<8x64xf32>, vector<64x256xf32>, vector<8x256xf32> -> vector<8x256xf32>
    %45 = arith.addf %43, %44 : vector<8x256xf32>
    %46 = vector.extract_strided_slice %45 {offsets = [0, 0], sizes = [8, 192], strides = [1, 1]} : vector<8x256xf32> to vector<8x192xf32>
    %47 = arith.negf %46 : vector<8x192xf32>
    %48 = math.exp %47 : vector<8x192xf32>
    %cst_19 = arith.constant 1.000000e+00 : f32
    %49 = vector.broadcast %cst_19 : f32 to vector<8x192xf32>
    %50 = arith.addf %49, %48 : vector<8x192xf32>
    %51 = arith.divf %49, %50 : vector<8x192xf32>
    %52 = vector.extract_strided_slice %51 {offsets = [0, 0], sizes = [8, 64], strides = [1, 1]} : vector<8x192xf32> to vector<8x64xf32>
    %53 = vector.extract_strided_slice %51 {offsets = [0, 64], sizes = [8, 64], strides = [1, 1]} : vector<8x192xf32> to vector<8x64xf32>
    %54 = vector.extract_strided_slice %51 {offsets = [0, 128], sizes = [8, 64], strides = [1, 1]} : vector<8x192xf32> to vector<8x64xf32>
    %55 = vector.extract_strided_slice %45 {offsets = [0, 192], sizes = [8, 64], strides = [1, 1]} : vector<8x256xf32> to vector<8x64xf32>
    %56 = math.tanh %55 : vector<8x64xf32>
    %57 = arith.mulf %53, %28 : vector<8x64xf32>
    %58 = arith.mulf %52, %56 : vector<8x64xf32>
    %59 = arith.addf %57, %58 : vector<8x64xf32>
    %60 = math.tanh %59 : vector<8x64xf32>
    %61 = arith.mulf %54, %60 : vector<8x64xf32>
    %62 = vector.extract_strided_slice %61 {offsets = [0, 0], sizes = [8, 32], strides = [1, 1]} : vector<8x64xf32> to vector<8x32xf32>
    %63 = arith.index_cast %41 : i32 to index
    %c0_20 = arith.constant 0 : index
    %64 = vector.load %arg15[%63, %c0_20] : memref<64x32xf32, #tpu.memory_space<vmem>>, vector<8x32xf32>
    tpu.vector_store %arg15[%63, %c0_20], %62 {strides = array<i32>} : memref<64x32xf32, #tpu.memory_space<vmem>>, vector<8x32xf32>,
    %c7_i32_21 = arith.constant 7 : i32
    %65 = arith.subi %c7_i32_21, %c1_i32 : i32
    %c8_i32_22 = arith.constant 8 : i32
    %66 = arith.muli %65, %c8_i32_22 : i32
    %67 = tpu.assume_multiple %66, 8 : i32
    %68 = vector.extract_strided_slice %61 {offsets = [0, 32], sizes = [8, 32], strides = [1, 1]} : vector<8x64xf32> to vector<8x32xf32>
    %69 = arith.index_cast %67 : i32 to index
    %c0_23 = arith.constant 0 : index
    %70 = vector.load %arg16[%69, %c0_23] : memref<64x32xf32, #tpu.memory_space<vmem>>, vector<8x32xf32>
    tpu.vector_store %arg16[%69, %c0_23], %68 {strides = array<i32>} : memref<64x32xf32, #tpu.memory_space<vmem>>, vector<8x32xf32>,
    %c2_i32 = arith.constant 2 : i32
    %c8_i32_24 = arith.constant 8 : i32
    %71 = arith.muli %c2_i32, %c8_i32_24 : i32
    %72 = tpu.assume_multiple %71, 8 : i32
    %73 = arith.index_cast %72 : i32 to index
    %c0_25 = arith.constant 0 : index
    %74 = vector.load %arg14[%73, %c0_25] : memref<64x256xf32, #tpu.memory_space<vmem>>, vector<8x256xf32>
    %cst_26 = arith.constant dense<0.000000e+00> : vector<8x256xf32>
    %75 = tpu.matmul %61, %7, %cst_26 {dimension_numbers = #tpu.dot_dimension_numbers<[1], [0], [0], [1], [0, 0, 1, 1], [], []>} : vector<8x64xf32>, vector<64x256xf32>, vector<8x256xf32> -> vector<8x256xf32>
    %76 = arith.addf %74, %75 : vector<8x256xf32>
    %77 = vector.extract_strided_slice %76 {offsets = [0, 0], sizes = [8, 192], strides = [1, 1]} : vector<8x256xf32> to vector<8x192xf32>
    %78 = arith.negf %77 : vector<8x192xf32>
    %79 = math.exp %78 : vector<8x192xf32>
    %cst_27 = arith.constant 1.000000e+00 : f32
    %80 = vector.broadcast %cst_27 : f32 to vector<8x192xf32>
    %81 = arith.addf %80, %79 : vector<8x192xf32>
    %82 = arith.divf %80, %81 : vector<8x192xf32>
    %83 = vector.extract_strided_slice %82 {offsets = [0, 0], sizes = [8, 64], strides = [1, 1]} : vector<8x192xf32> to vector<8x64xf32>
    %84 = vector.extract_strided_slice %82 {offsets = [0, 64], sizes = [8, 64], strides = [1, 1]} : vector<8x192xf32> to vector<8x64xf32>
    %85 = vector.extract_strided_slice %82 {offsets = [0, 128], sizes = [8, 64], strides = [1, 1]} : vector<8x192xf32> to vector<8x64xf32>
    %86 = vector.extract_strided_slice %76 {offsets = [0, 192], sizes = [8, 64], strides = [1, 1]} : vector<8x256xf32> to vector<8x64xf32>
    %87 = math.tanh %86 : vector<8x64xf32>
    %88 = arith.mulf %84, %59 : vector<8x64xf32>
    %89 = arith.mulf %83, %87 : vector<8x64xf32>
    %90 = arith.addf %88, %89 : vector<8x64xf32>
    %91 = math.tanh %90 : vector<8x64xf32>
    %92 = arith.mulf %85, %91 : vector<8x64xf32>
    %93 = vector.extract_strided_slice %92 {offsets = [0, 0], sizes = [8, 32], strides = [1, 1]} : vector<8x64xf32> to vector<8x32xf32>
    %94 = arith.index_cast %72 : i32 to index
    %c0_28 = arith.constant 0 : index
    %95 = vector.load %arg15[%94, %c0_28] : memref<64x32xf32, #tpu.memory_space<vmem>>, vector<8x32xf32>
    tpu.vector_store %arg15[%94, %c0_28], %93 {strides = array<i32>} : memref<64x32xf32, #tpu.memory_space<vmem>>, vector<8x32xf32>,
    %c7_i32_29 = arith.constant 7 : i32
    %96 = arith.subi %c7_i32_29, %c2_i32 : i32
    %c8_i32_30 = arith.constant 8 : i32
    %97 = arith.muli %96, %c8_i32_30 : i32
    %98 = tpu.assume_multiple %97, 8 : i32
    %99 = vector.extract_strided_slice %92 {offsets = [0, 32], sizes = [8, 32], strides = [1, 1]} : vector<8x64xf32> to vector<8x32xf32>
    %100 = arith.index_cast %98 : i32 to index
    %c0_31 = arith.constant 0 : index
    %101 = vector.load %arg16[%100, %c0_31] : memref<64x32xf32, #tpu.memory_space<vmem>>, vector<8x32xf32>
    tpu.vector_store %arg16[%100, %c0_31], %99 {strides = array<i32>} : memref<64x32xf32, #tpu.memory_space<vmem>>, vector<8x32xf32>,
    %c3_i32 = arith.constant 3 : i32
    %c8_i32_32 = arith.constant 8 : i32
    %102 = arith.muli %c3_i32, %c8_i32_32 : i32
    %103 = tpu.assume_multiple %102, 8 : i32
    %104 = arith.index_cast %103 : i32 to index
    %c0_33 = arith.constant 0 : index
    %105 = vector.load %arg14[%104, %c0_33] : memref<64x256xf32, #tpu.memory_space<vmem>>, vector<8x256xf32>
    %cst_34 = arith.constant dense<0.000000e+00> : vector<8x256xf32>
    %106 = tpu.matmul %92, %7, %cst_34 {dimension_numbers = #tpu.dot_dimension_numbers<[1], [0], [0], [1], [0, 0, 1, 1], [], []>} : vector<8x64xf32>, vector<64x256xf32>, vector<8x256xf32> -> vector<8x256xf32>
    %107 = arith.addf %105, %106 : vector<8x256xf32>
    %108 = vector.extract_strided_slice %107 {offsets = [0, 0], sizes = [8, 192], strides = [1, 1]} : vector<8x256xf32> to vector<8x192xf32>
    %109 = arith.negf %108 : vector<8x192xf32>
    %110 = math.exp %109 : vector<8x192xf32>
    %cst_35 = arith.constant 1.000000e+00 : f32
    %111 = vector.broadcast %cst_35 : f32 to vector<8x192xf32>
    %112 = arith.addf %111, %110 : vector<8x192xf32>
    %113 = arith.divf %111, %112 : vector<8x192xf32>
    %114 = vector.extract_strided_slice %113 {offsets = [0, 0], sizes = [8, 64], strides = [1, 1]} : vector<8x192xf32> to vector<8x64xf32>
    %115 = vector.extract_strided_slice %113 {offsets = [0, 64], sizes = [8, 64], strides = [1, 1]} : vector<8x192xf32> to vector<8x64xf32>
    %116 = vector.extract_strided_slice %113 {offsets = [0, 128], sizes = [8, 64], strides = [1, 1]} : vector<8x192xf32> to vector<8x64xf32>
    %117 = vector.extract_strided_slice %107 {offsets = [0, 192], sizes = [8, 64], strides = [1, 1]} : vector<8x256xf32> to vector<8x64xf32>
    %118 = math.tanh %117 : vector<8x64xf32>
    %119 = arith.mulf %115, %90 : vector<8x64xf32>
    %120 = arith.mulf %114, %118 : vector<8x64xf32>
    %121 = arith.addf %119, %120 : vector<8x64xf32>
    %122 = math.tanh %121 : vector<8x64xf32>
    %123 = arith.mulf %116, %122 : vector<8x64xf32>
    %124 = vector.extract_strided_slice %123 {offsets = [0, 0], sizes = [8, 32], strides = [1, 1]} : vector<8x64xf32> to vector<8x32xf32>
    %125 = arith.index_cast %103 : i32 to index
    %c0_36 = arith.constant 0 : index
    %126 = vector.load %arg15[%125, %c0_36] : memref<64x32xf32, #tpu.memory_space<vmem>>, vector<8x32xf32>
    tpu.vector_store %arg15[%125, %c0_36], %124 {strides = array<i32>} : memref<64x32xf32, #tpu.memory_space<vmem>>, vector<8x32xf32>,
    %c7_i32_37 = arith.constant 7 : i32
    %127 = arith.subi %c7_i32_37, %c3_i32 : i32
    %c8_i32_38 = arith.constant 8 : i32
    %128 = arith.muli %127, %c8_i32_38 : i32
    %129 = tpu.assume_multiple %128, 8 : i32
    %130 = vector.extract_strided_slice %123 {offsets = [0, 32], sizes = [8, 32], strides = [1, 1]} : vector<8x64xf32> to vector<8x32xf32>
    %131 = arith.index_cast %129 : i32 to index
    %c0_39 = arith.constant 0 : index
    %132 = vector.load %arg16[%131, %c0_39] : memref<64x32xf32, #tpu.memory_space<vmem>>, vector<8x32xf32>
    tpu.vector_store %arg16[%131, %c0_39], %130 {strides = array<i32>} : memref<64x32xf32, #tpu.memory_space<vmem>>, vector<8x32xf32>,
    %c4_i32 = arith.constant 4 : i32
    %c8_i32_40 = arith.constant 8 : i32
    %133 = arith.muli %c4_i32, %c8_i32_40 : i32
    %134 = tpu.assume_multiple %133, 8 : i32
    %135 = arith.index_cast %134 : i32 to index
    %c0_41 = arith.constant 0 : index
    %136 = vector.load %arg14[%135, %c0_41] : memref<64x256xf32, #tpu.memory_space<vmem>>, vector<8x256xf32>
    %cst_42 = arith.constant dense<0.000000e+00> : vector<8x256xf32>
    %137 = tpu.matmul %123, %7, %cst_42 {dimension_numbers = #tpu.dot_dimension_numbers<[1], [0], [0], [1], [0, 0, 1, 1], [], []>} : vector<8x64xf32>, vector<64x256xf32>, vector<8x256xf32> -> vector<8x256xf32>
    %138 = arith.addf %136, %137 : vector<8x256xf32>
    %139 = vector.extract_strided_slice %138 {offsets = [0, 0], sizes = [8, 192], strides = [1, 1]} : vector<8x256xf32> to vector<8x192xf32>
    %140 = arith.negf %139 : vector<8x192xf32>
    %141 = math.exp %140 : vector<8x192xf32>
    %cst_43 = arith.constant 1.000000e+00 : f32
    %142 = vector.broadcast %cst_43 : f32 to vector<8x192xf32>
    %143 = arith.addf %142, %141 : vector<8x192xf32>
    %144 = arith.divf %142, %143 : vector<8x192xf32>
    %145 = vector.extract_strided_slice %144 {offsets = [0, 0], sizes = [8, 64], strides = [1, 1]} : vector<8x192xf32> to vector<8x64xf32>
    %146 = vector.extract_strided_slice %144 {offsets = [0, 64], sizes = [8, 64], strides = [1, 1]} : vector<8x192xf32> to vector<8x64xf32>
    %147 = vector.extract_strided_slice %144 {offsets = [0, 128], sizes = [8, 64], strides = [1, 1]} : vector<8x192xf32> to vector<8x64xf32>
    %148 = vector.extract_strided_slice %138 {offsets = [0, 192], sizes = [8, 64], strides = [1, 1]} : vector<8x256xf32> to vector<8x64xf32>
    %149 = math.tanh %148 : vector<8x64xf32>
    %150 = arith.mulf %146, %121 : vector<8x64xf32>
    %151 = arith.mulf %145, %149 : vector<8x64xf32>
    %152 = arith.addf %150, %151 : vector<8x64xf32>
    %153 = math.tanh %152 : vector<8x64xf32>
    %154 = arith.mulf %147, %153 : vector<8x64xf32>
    %155 = vector.extract_strided_slice %154 {offsets = [0, 0], sizes = [8, 32], strides = [1, 1]} : vector<8x64xf32> to vector<8x32xf32>
    %156 = arith.index_cast %134 : i32 to index
    %c0_44 = arith.constant 0 : index
    %157 = vector.load %arg15[%156, %c0_44] : memref<64x32xf32, #tpu.memory_space<vmem>>, vector<8x32xf32>
    tpu.vector_store %arg15[%156, %c0_44], %155 {strides = array<i32>} : memref<64x32xf32, #tpu.memory_space<vmem>>, vector<8x32xf32>,
    %c7_i32_45 = arith.constant 7 : i32
    %158 = arith.subi %c7_i32_45, %c4_i32 : i32
    %c8_i32_46 = arith.constant 8 : i32
    %159 = arith.muli %158, %c8_i32_46 : i32
    %160 = tpu.assume_multiple %159, 8 : i32
    %161 = vector.extract_strided_slice %154 {offsets = [0, 32], sizes = [8, 32], strides = [1, 1]} : vector<8x64xf32> to vector<8x32xf32>
    %162 = arith.index_cast %160 : i32 to index
    %c0_47 = arith.constant 0 : index
    %163 = vector.load %arg16[%162, %c0_47] : memref<64x32xf32, #tpu.memory_space<vmem>>, vector<8x32xf32>
    tpu.vector_store %arg16[%162, %c0_47], %161 {strides = array<i32>} : memref<64x32xf32, #tpu.memory_space<vmem>>, vector<8x32xf32>,
    %c5_i32 = arith.constant 5 : i32
    %c8_i32_48 = arith.constant 8 : i32
    %164 = arith.muli %c5_i32, %c8_i32_48 : i32
    %165 = tpu.assume_multiple %164, 8 : i32
    %166 = arith.index_cast %165 : i32 to index
    %c0_49 = arith.constant 0 : index
    %167 = vector.load %arg14[%166, %c0_49] : memref<64x256xf32, #tpu.memory_space<vmem>>, vector<8x256xf32>
    %cst_50 = arith.constant dense<0.000000e+00> : vector<8x256xf32>
    %168 = tpu.matmul %154, %7, %cst_50 {dimension_numbers = #tpu.dot_dimension_numbers<[1], [0], [0], [1], [0, 0, 1, 1], [], []>} : vector<8x64xf32>, vector<64x256xf32>, vector<8x256xf32> -> vector<8x256xf32>
    %169 = arith.addf %167, %168 : vector<8x256xf32>
    %170 = vector.extract_strided_slice %169 {offsets = [0, 0], sizes = [8, 192], strides = [1, 1]} : vector<8x256xf32> to vector<8x192xf32>
    %171 = arith.negf %170 : vector<8x192xf32>
    %172 = math.exp %171 : vector<8x192xf32>
    %cst_51 = arith.constant 1.000000e+00 : f32
    %173 = vector.broadcast %cst_51 : f32 to vector<8x192xf32>
    %174 = arith.addf %173, %172 : vector<8x192xf32>
    %175 = arith.divf %173, %174 : vector<8x192xf32>
    %176 = vector.extract_strided_slice %175 {offsets = [0, 0], sizes = [8, 64], strides = [1, 1]} : vector<8x192xf32> to vector<8x64xf32>
    %177 = vector.extract_strided_slice %175 {offsets = [0, 64], sizes = [8, 64], strides = [1, 1]} : vector<8x192xf32> to vector<8x64xf32>
    %178 = vector.extract_strided_slice %175 {offsets = [0, 128], sizes = [8, 64], strides = [1, 1]} : vector<8x192xf32> to vector<8x64xf32>
    %179 = vector.extract_strided_slice %169 {offsets = [0, 192], sizes = [8, 64], strides = [1, 1]} : vector<8x256xf32> to vector<8x64xf32>
    %180 = math.tanh %179 : vector<8x64xf32>
    %181 = arith.mulf %177, %152 : vector<8x64xf32>
    %182 = arith.mulf %176, %180 : vector<8x64xf32>
    %183 = arith.addf %181, %182 : vector<8x64xf32>
    %184 = math.tanh %183 : vector<8x64xf32>
    %185 = arith.mulf %178, %184 : vector<8x64xf32>
    %186 = vector.extract_strided_slice %185 {offsets = [0, 0], sizes = [8, 32], strides = [1, 1]} : vector<8x64xf32> to vector<8x32xf32>
    %187 = arith.index_cast %165 : i32 to index
    %c0_52 = arith.constant 0 : index
    %188 = vector.load %arg15[%187, %c0_52] : memref<64x32xf32, #tpu.memory_space<vmem>>, vector<8x32xf32>
    tpu.vector_store %arg15[%187, %c0_52], %186 {strides = array<i32>} : memref<64x32xf32, #tpu.memory_space<vmem>>, vector<8x32xf32>,
    %c7_i32_53 = arith.constant 7 : i32
    %189 = arith.subi %c7_i32_53, %c5_i32 : i32
    %c8_i32_54 = arith.constant 8 : i32
    %190 = arith.muli %189, %c8_i32_54 : i32
    %191 = tpu.assume_multiple %190, 8 : i32
    %192 = vector.extract_strided_slice %185 {offsets = [0, 32], sizes = [8, 32], strides = [1, 1]} : vector<8x64xf32> to vector<8x32xf32>
    %193 = arith.index_cast %191 : i32 to index
    %c0_55 = arith.constant 0 : index
    %194 = vector.load %arg16[%193, %c0_55] : memref<64x32xf32, #tpu.memory_space<vmem>>, vector<8x32xf32>
    tpu.vector_store %arg16[%193, %c0_55], %192 {strides = array<i32>} : memref<64x32xf32, #tpu.memory_space<vmem>>, vector<8x32xf32>,
    %c6_i32 = arith.constant 6 : i32
    %c8_i32_56 = arith.constant 8 : i32
    %195 = arith.muli %c6_i32, %c8_i32_56 : i32
    %196 = tpu.assume_multiple %195, 8 : i32
    %197 = arith.index_cast %196 : i32 to index
    %c0_57 = arith.constant 0 : index
    %198 = vector.load %arg14[%197, %c0_57] : memref<64x256xf32, #tpu.memory_space<vmem>>, vector<8x256xf32>
    %cst_58 = arith.constant dense<0.000000e+00> : vector<8x256xf32>
    %199 = tpu.matmul %185, %7, %cst_58 {dimension_numbers = #tpu.dot_dimension_numbers<[1], [0], [0], [1], [0, 0, 1, 1], [], []>} : vector<8x64xf32>, vector<64x256xf32>, vector<8x256xf32> -> vector<8x256xf32>
    %200 = arith.addf %198, %199 : vector<8x256xf32>
    %201 = vector.extract_strided_slice %200 {offsets = [0, 0], sizes = [8, 192], strides = [1, 1]} : vector<8x256xf32> to vector<8x192xf32>
    %202 = arith.negf %201 : vector<8x192xf32>
    %203 = math.exp %202 : vector<8x192xf32>
    %cst_59 = arith.constant 1.000000e+00 : f32
    %204 = vector.broadcast %cst_59 : f32 to vector<8x192xf32>
    %205 = arith.addf %204, %203 : vector<8x192xf32>
    %206 = arith.divf %204, %205 : vector<8x192xf32>
    %207 = vector.extract_strided_slice %206 {offsets = [0, 0], sizes = [8, 64], strides = [1, 1]} : vector<8x192xf32> to vector<8x64xf32>
    %208 = vector.extract_strided_slice %206 {offsets = [0, 64], sizes = [8, 64], strides = [1, 1]} : vector<8x192xf32> to vector<8x64xf32>
    %209 = vector.extract_strided_slice %206 {offsets = [0, 128], sizes = [8, 64], strides = [1, 1]} : vector<8x192xf32> to vector<8x64xf32>
    %210 = vector.extract_strided_slice %200 {offsets = [0, 192], sizes = [8, 64], strides = [1, 1]} : vector<8x256xf32> to vector<8x64xf32>
    %211 = math.tanh %210 : vector<8x64xf32>
    %212 = arith.mulf %208, %183 : vector<8x64xf32>
    %213 = arith.mulf %207, %211 : vector<8x64xf32>
    %214 = arith.addf %212, %213 : vector<8x64xf32>
    %215 = math.tanh %214 : vector<8x64xf32>
    %216 = arith.mulf %209, %215 : vector<8x64xf32>
    %217 = vector.extract_strided_slice %216 {offsets = [0, 0], sizes = [8, 32], strides = [1, 1]} : vector<8x64xf32> to vector<8x32xf32>
    %218 = arith.index_cast %196 : i32 to index
    %c0_60 = arith.constant 0 : index
    %219 = vector.load %arg15[%218, %c0_60] : memref<64x32xf32, #tpu.memory_space<vmem>>, vector<8x32xf32>
    tpu.vector_store %arg15[%218, %c0_60], %217 {strides = array<i32>} : memref<64x32xf32, #tpu.memory_space<vmem>>, vector<8x32xf32>,
    %c7_i32_61 = arith.constant 7 : i32
    %220 = arith.subi %c7_i32_61, %c6_i32 : i32
    %c8_i32_62 = arith.constant 8 : i32
    %221 = arith.muli %220, %c8_i32_62 : i32
    %222 = tpu.assume_multiple %221, 8 : i32
    %223 = vector.extract_strided_slice %216 {offsets = [0, 32], sizes = [8, 32], strides = [1, 1]} : vector<8x64xf32> to vector<8x32xf32>
    %224 = arith.index_cast %222 : i32 to index
    %c0_63 = arith.constant 0 : index
    %225 = vector.load %arg16[%224, %c0_63] : memref<64x32xf32, #tpu.memory_space<vmem>>, vector<8x32xf32>
    tpu.vector_store %arg16[%224, %c0_63], %223 {strides = array<i32>} : memref<64x32xf32, #tpu.memory_space<vmem>>, vector<8x32xf32>,
    %c7_i32_64 = arith.constant 7 : i32
    %c8_i32_65 = arith.constant 8 : i32
    %226 = arith.muli %c7_i32_64, %c8_i32_65 : i32
    %227 = tpu.assume_multiple %226, 8 : i32
    %228 = arith.index_cast %227 : i32 to index
    %c0_66 = arith.constant 0 : index
    %229 = vector.load %arg14[%228, %c0_66] : memref<64x256xf32, #tpu.memory_space<vmem>>, vector<8x256xf32>
    %cst_67 = arith.constant dense<0.000000e+00> : vector<8x256xf32>
    %230 = tpu.matmul %216, %7, %cst_67 {dimension_numbers = #tpu.dot_dimension_numbers<[1], [0], [0], [1], [0, 0, 1, 1], [], []>} : vector<8x64xf32>, vector<64x256xf32>, vector<8x256xf32> -> vector<8x256xf32>
    %231 = arith.addf %229, %230 : vector<8x256xf32>
    %232 = vector.extract_strided_slice %231 {offsets = [0, 0], sizes = [8, 192], strides = [1, 1]} : vector<8x256xf32> to vector<8x192xf32>
    %233 = arith.negf %232 : vector<8x192xf32>
    %234 = math.exp %233 : vector<8x192xf32>
    %cst_68 = arith.constant 1.000000e+00 : f32
    %235 = vector.broadcast %cst_68 : f32 to vector<8x192xf32>
    %236 = arith.addf %235, %234 : vector<8x192xf32>
    %237 = arith.divf %235, %236 : vector<8x192xf32>
    %238 = vector.extract_strided_slice %237 {offsets = [0, 0], sizes = [8, 64], strides = [1, 1]} : vector<8x192xf32> to vector<8x64xf32>
    %239 = vector.extract_strided_slice %237 {offsets = [0, 64], sizes = [8, 64], strides = [1, 1]} : vector<8x192xf32> to vector<8x64xf32>
    %240 = vector.extract_strided_slice %237 {offsets = [0, 128], sizes = [8, 64], strides = [1, 1]} : vector<8x192xf32> to vector<8x64xf32>
    %241 = vector.extract_strided_slice %231 {offsets = [0, 192], sizes = [8, 64], strides = [1, 1]} : vector<8x256xf32> to vector<8x64xf32>
    %242 = math.tanh %241 : vector<8x64xf32>
    %243 = arith.mulf %239, %214 : vector<8x64xf32>
    %244 = arith.mulf %238, %242 : vector<8x64xf32>
    %245 = arith.addf %243, %244 : vector<8x64xf32>
    %246 = math.tanh %245 : vector<8x64xf32>
    %247 = arith.mulf %240, %246 : vector<8x64xf32>
    %248 = vector.extract_strided_slice %247 {offsets = [0, 0], sizes = [8, 32], strides = [1, 1]} : vector<8x64xf32> to vector<8x32xf32>
    %249 = arith.index_cast %227 : i32 to index
    %c0_69 = arith.constant 0 : index
    %250 = vector.load %arg15[%249, %c0_69] : memref<64x32xf32, #tpu.memory_space<vmem>>, vector<8x32xf32>
    tpu.vector_store %arg15[%249, %c0_69], %248 {strides = array<i32>} : memref<64x32xf32, #tpu.memory_space<vmem>>, vector<8x32xf32>,
    %c7_i32_70 = arith.constant 7 : i32
    %251 = arith.subi %c7_i32_70, %c7_i32_64 : i32
    %c8_i32_71 = arith.constant 8 : i32
    %252 = arith.muli %251, %c8_i32_71 : i32
    %253 = tpu.assume_multiple %252, 8 : i32
    %254 = vector.extract_strided_slice %247 {offsets = [0, 32], sizes = [8, 32], strides = [1, 1]} : vector<8x64xf32> to vector<8x32xf32>
    %255 = arith.index_cast %253 : i32 to index
    %c0_72 = arith.constant 0 : index
    %256 = vector.load %arg16[%255, %c0_72] : memref<64x32xf32, #tpu.memory_space<vmem>>, vector<8x32xf32>
    tpu.vector_store %arg16[%255, %c0_72], %254 {strides = array<i32>} : memref<64x32xf32, #tpu.memory_space<vmem>>, vector<8x32xf32>,
    %c8_i32_73 = arith.constant 8 : i32
    %c0_74 = arith.constant 0 : index
    %c0_75 = arith.constant 0 : index
    %257 = vector.load %arg15[%c0_74, %c0_75] : memref<64x32xf32, #tpu.memory_space<vmem>>, vector<64x32xf32>
    %c0_76 = arith.constant 0 : index
    %c0_77 = arith.constant 0 : index
    %258 = vector.load %arg5[%c0_76, %c0_77] : memref<32x256xf32, #tpu.memory_space<vmem>>, vector<32x256xf32>
    %cst_78 = arith.constant dense<0.000000e+00> : vector<64x256xf32>
    %259 = tpu.matmul %257, %258, %cst_78 {dimension_numbers = #tpu.dot_dimension_numbers<[1], [0], [0], [1], [0, 0, 1, 1], [], []>} : vector<64x32xf32>, vector<32x256xf32>, vector<64x256xf32> -> vector<64x256xf32>
    %c0_79 = arith.constant 0 : index
    %c0_80 = arith.constant 0 : index
    %260 = vector.load %arg16[%c0_79, %c0_80] : memref<64x32xf32, #tpu.memory_space<vmem>>, vector<64x32xf32>
    %c0_81 = arith.constant 0 : index
    %c0_82 = arith.constant 0 : index
    %261 = vector.load %arg6[%c0_81, %c0_82] : memref<32x256xf32, #tpu.memory_space<vmem>>, vector<32x256xf32>
    %cst_83 = arith.constant dense<0.000000e+00> : vector<64x256xf32>
    %262 = tpu.matmul %260, %261, %cst_83 {dimension_numbers = #tpu.dot_dimension_numbers<[1], [0], [0], [1], [0, 0, 1, 1], [], []>} : vector<64x32xf32>, vector<32x256xf32>, vector<64x256xf32> -> vector<64x256xf32>
    %263 = arith.addf %259, %262 : vector<64x256xf32>
    %c0_84 = arith.constant 0 : index
    %c0_85 = arith.constant 0 : index
    %264 = vector.load %arg7[%c0_84, %c0_85] : memref<1x256xf32, #tpu.memory_space<vmem>>, vector<1x256xf32>
    %265 = vector.broadcast %264 : vector<1x256xf32> to vector<64x256xf32>
    %266 = arith.addf %263, %265 : vector<64x256xf32>
    %267 = vector.extract_strided_slice %266 {offsets = [0, 0], sizes = [64, 128], strides = [1, 1]} : vector<64x256xf32> to vector<64x128xf32>
    %268 = vector.extract_strided_slice %266 {offsets = [0, 128], sizes = [64, 128], strides = [1, 1]} : vector<64x256xf32> to vector<64x128xf32>
    %c0_86 = arith.constant 0 : index
    %c0_87 = arith.constant 0 : index
    %269 = vector.load %arg12[%c0_86, %c0_87] : memref<64x128xf32, #tpu.memory_space<vmem>>, vector<64x128xf32>
    tpu.vector_store %arg12[%c0_86, %c0_87], %267 {strides = array<i32>} : memref<64x128xf32, #tpu.memory_space<vmem>>, vector<64x128xf32>,
    %c0_88 = arith.constant 0 : index
    %c0_89 = arith.constant 0 : index
    %270 = vector.load %arg8[%c0_88, %c0_89] : memref<64x1xi32, #tpu.memory_space<vmem>>, vector<64x1xi32>
    %c0_90 = arith.constant 0 : index
    %c0_91 = arith.constant 0 : index
    %271 = vector.load %arg9[%c0_90, %c0_91] : memref<64x1xf32, #tpu.memory_space<vmem>>, vector<64x1xf32>
    %cst_92 = arith.constant dense<0xFF800000> : vector<64xf32>
    %272 = vector.multi_reduction <maximumf>, %267, %cst_92 [1] : vector<64x128xf32> to vector<64xf32>
    %273 = vector.shape_cast %272 : vector<64xf32> to vector<64x1xf32>
    %274 = vector.broadcast %273 : vector<64x1xf32> to vector<64x128xf32>
    %275 = arith.subf %267, %274 : vector<64x128xf32>
    %276 = math.exp %275 : vector<64x128xf32>
    %cst_93 = arith.constant dense<0.000000e+00> : vector<64xf32>
    %277 = vector.multi_reduction <add>, %276, %cst_93 [1] : vector<64x128xf32> to vector<64xf32>
    %278 = vector.shape_cast %277 : vector<64xf32> to vector<64x1xf32>
    %279 = math.log %278 : vector<64x1xf32>
    %280 = arith.addf %273, %279 : vector<64x1xf32>
    %281 = tpu.iota {dimensions = array<i32: 1>} : vector<64x128xi32>
    %282 = vector.broadcast %270 : vector<64x1xi32> to vector<64x128xi32>
    %283 = arith.cmpi eq, %281, %282 : vector<64x128xi32>
    %cst_94 = arith.constant 0.000000e+00 : f32
    %284 = vector.broadcast %cst_94 : f32 to vector<64x128xf32>
    %285 = arith.select %283, %267, %284 : vector<64x128xi1>, vector<64x128xf32>
    %cst_95 = arith.constant dense<0.000000e+00> : vector<64xf32>
    %286 = vector.multi_reduction <add>, %285, %cst_95 [1] : vector<64x128xf32> to vector<64xf32>
    %287 = vector.shape_cast %286 : vector<64xf32> to vector<64x1xf32>
    %288 = arith.subf %280, %287 : vector<64x1xf32>
    %289 = arith.mulf %271, %288 : vector<64x1xf32>
    %cst_96 = arith.constant dense<0.000000e+00> : vector<1xf32>
    %290 = vector.multi_reduction <add>, %289, %cst_96 [0] : vector<64x1xf32> to vector<1xf32>
    %291 = vector.shape_cast %290 : vector<1xf32> to vector<1x1xf32>
    %cst_97 = arith.constant dense<0.000000e+00> : vector<1xf32>
    %292 = vector.multi_reduction <add>, %271, %cst_97 [0] : vector<64x1xf32> to vector<1xf32>
    %293 = vector.shape_cast %292 : vector<1xf32> to vector<1x1xf32>
    %c0_98 = arith.constant 0 : index
    %c0_99 = arith.constant 0 : index
    %294 = vector.load %arg10[%c0_98, %c0_99] : memref<64x1xi32, #tpu.memory_space<vmem>>, vector<64x1xi32>
    %c0_100 = arith.constant 0 : index
    %c0_101 = arith.constant 0 : index
    %295 = vector.load %arg11[%c0_100, %c0_101] : memref<64x1xf32, #tpu.memory_space<vmem>>, vector<64x1xf32>
    %cst_102 = arith.constant dense<0xFF800000> : vector<64xf32>
    %296 = vector.multi_reduction <maximumf>, %268, %cst_102 [1] : vector<64x128xf32> to vector<64xf32>
    %297 = vector.shape_cast %296 : vector<64xf32> to vector<64x1xf32>
    %298 = vector.broadcast %297 : vector<64x1xf32> to vector<64x128xf32>
    %299 = arith.subf %268, %298 : vector<64x128xf32>
    %300 = math.exp %299 : vector<64x128xf32>
    %cst_103 = arith.constant dense<0.000000e+00> : vector<64xf32>
    %301 = vector.multi_reduction <add>, %300, %cst_103 [1] : vector<64x128xf32> to vector<64xf32>
    %302 = vector.shape_cast %301 : vector<64xf32> to vector<64x1xf32>
    %303 = math.log %302 : vector<64x1xf32>
    %304 = arith.addf %297, %303 : vector<64x1xf32>
    %305 = tpu.iota {dimensions = array<i32: 1>} : vector<64x128xi32>
    %306 = vector.broadcast %294 : vector<64x1xi32> to vector<64x128xi32>
    %307 = arith.cmpi eq, %305, %306 : vector<64x128xi32>
    %cst_104 = arith.constant 0.000000e+00 : f32
    %308 = vector.broadcast %cst_104 : f32 to vector<64x128xf32>
    %309 = arith.select %307, %268, %308 : vector<64x128xi1>, vector<64x128xf32>
    %cst_105 = arith.constant dense<0.000000e+00> : vector<64xf32>
    %310 = vector.multi_reduction <add>, %309, %cst_105 [1] : vector<64x128xf32> to vector<64xf32>
    %311 = vector.shape_cast %310 : vector<64xf32> to vector<64x1xf32>
    %312 = arith.subf %304, %311 : vector<64x1xf32>
    %313 = arith.mulf %295, %312 : vector<64x1xf32>
    %cst_106 = arith.constant dense<0.000000e+00> : vector<1xf32>
    %314 = vector.multi_reduction <add>, %313, %cst_106 [0] : vector<64x1xf32> to vector<1xf32>
    %315 = vector.shape_cast %314 : vector<1xf32> to vector<1x1xf32>
    %cst_107 = arith.constant dense<0.000000e+00> : vector<1xf32>
    %316 = vector.multi_reduction <add>, %295, %cst_107 [0] : vector<64x1xf32> to vector<1xf32>
    %317 = vector.shape_cast %316 : vector<1xf32> to vector<1x1xf32>
    %318 = arith.divf %291, %293 : vector<1x1xf32>
    %319 = arith.divf %315, %317 : vector<1x1xf32>
    %320 = arith.addf %318, %319 : vector<1x1xf32>
    %c0_108 = arith.constant 0 : index
    %c0_109 = arith.constant 0 : index
    %321 = vector.load %arg13[%c0_108, %c0_109] : memref<1x1xf32, #tpu.memory_space<vmem>>, vector<1x1xf32>
    tpu.vector_store %arg13[%c0_108, %c0_109], %320 {strides = array<i32>} : memref<1x1xf32, #tpu.memory_space<vmem>>, vector<1x1xf32>,
    return
  }
  func.func @transform_0(%arg0: i32) -> (i32, i32) {
    %c0_i32 = arith.constant 0 : i32
    %c0_i32_0 = arith.constant 0 : i32
    %c0_i32_1 = arith.constant 0 : i32
    return %c0_i32, %c0_i32_0 : i32, i32
  }
  func.func @transform_1(%arg0: i32) -> (i32, i32) {
    %c0_i32 = arith.constant 0 : i32
    %c0_i32_0 = arith.constant 0 : i32
    %c0_i32_1 = arith.constant 0 : i32
    return %c0_i32, %c0_i32_0 : i32, i32
  }
  func.func @transform_2(%arg0: i32) -> (i32, i32) {
    %c0_i32 = arith.constant 0 : i32
    %c0_i32_0 = arith.constant 0 : i32
    %c0_i32_1 = arith.constant 0 : i32
    return %c0_i32, %c0_i32_0 : i32, i32
  }
  func.func @transform_3(%arg0: i32) -> (i32, i32) {
    %c0_i32 = arith.constant 0 : i32
    %c0_i32_0 = arith.constant 0 : i32
    %c0_i32_1 = arith.constant 0 : i32
    return %c0_i32, %c0_i32_0 : i32, i32
  }
  func.func @transform_4(%arg0: i32) -> (i32, i32) {
    %c0_i32 = arith.constant 0 : i32
    %c0_i32_0 = arith.constant 0 : i32
    %c0_i32_1 = arith.constant 0 : i32
    return %c0_i32, %c0_i32_0 : i32, i32
  }
  func.func @transform_5(%arg0: i32) -> (i32, i32) {
    %c0_i32 = arith.constant 0 : i32
    %c0_i32_0 = arith.constant 0 : i32
    %c0_i32_1 = arith.constant 0 : i32
    return %c0_i32, %c0_i32_0 : i32, i32
  }
  func.func @transform_6(%arg0: i32) -> (i32, i32) {
    %c0_i32 = arith.constant 0 : i32
    %c0_i32_0 = arith.constant 0 : i32
    %c0_i32_1 = arith.constant 0 : i32
    return %c0_i32, %c0_i32_0 : i32, i32
  }
  func.func @transform_7(%arg0: i32) -> (i32, i32) {
    %c0_i32 = arith.constant 0 : i32
    %c0_i32_0 = arith.constant 0 : i32
    %c0_i32_1 = arith.constant 0 : i32
    return %c0_i32, %c0_i32_0 : i32, i32
  }
  func.func @transform_8(%arg0: i32) -> (i32, i32) {
    %c0_i32 = arith.constant 0 : i32
    %c0_i32_0 = arith.constant 0 : i32
    %c0_i32_1 = arith.constant 0 : i32
    return %c0_i32, %c0_i32_0 : i32, i32
  }
  func.func @transform_9(%arg0: i32) -> (i32, i32) {
    %c0_i32 = arith.constant 0 : i32
    %c0_i32_0 = arith.constant 0 : i32
    %c0_i32_1 = arith.constant 0 : i32
    return %c0_i32, %c0_i32_0 : i32, i32
  }
  func.func @transform_10(%arg0: i32) -> (i32, i32) {
    %c0_i32 = arith.constant 0 : i32
    %c0_i32_0 = arith.constant 0 : i32
    %c0_i32_1 = arith.constant 0 : i32
    return %c0_i32, %c0_i32_0 : i32, i32
  }
  func.func @transform_11(%arg0: i32) -> (i32, i32) {
    %c0_i32 = arith.constant 0 : i32
    %c0_i32_0 = arith.constant 0 : i32
    %c0_i32_1 = arith.constant 0 : i32
    return %c0_i32, %c0_i32_0 : i32, i32
  }
  func.func @transform_12(%arg0: i32) -> (i32, i32) {
    %c0_i32 = arith.constant 0 : i32
    %c0_i32_0 = arith.constant 0 : i32
    %c0_i32_1 = arith.constant 0 : i32
    return %c0_i32, %c0_i32_0 : i32, i32
  }
}

</mosaic_0001>

<llo_original>
// kernel: tpu_custom_call.1
$region0: #{tpu_custom_call.1}
  #allocation0 [shape = 'u32[]', space=smem, size = 0x4, offset = 0x4, fixed_abs, tag = 'smem constant byte address 0x4 - core index']
  #allocation1 [shape = 'u32[144,128]{1,0:T(1,128)}', space=vmem, size = 0x12000, scoped, tag = 'internal scratch']
  #allocation2 [shape = 'f32[64,256]{1,0:T(8,128)}', space=vmem, size = 0x10000, scoped, tag = 'scratch operand']
  #allocation3 [shape = 'f32[64,32]{1,0:T(8,128)}', space=vmem, size = 0x8000, scoped, tag = 'scratch operand']
  #allocation4 [shape = 'f32[64,32]{1,0:T(8,128)}', space=vmem, size = 0x8000, scoped, tag = 'scratch operand']
  %s0 = inlined_call_operand.hbm [shape: f32[64,64], index: 0, kind: input, shape index: {}]
  %s1 = inlined_call_operand.vmem [shape: f32[64,256], index: 1, kind: input, shape index: {}]
  %s2 = inlined_call_operand.vmem [shape: f32[64,256], index: 2, kind: input, shape index: {}]
  %s3 = inlined_call_operand.vmem [shape: f32[1,256], index: 3, kind: input, shape index: {}]
  %s4 = inlined_call_operand.hbm [shape: f32[32,256], index: 4, kind: input, shape index: {}]
  %s5 = inlined_call_operand.hbm [shape: f32[32,256], index: 5, kind: input, shape index: {}]
  %s6 = inlined_call_operand.vmem [shape: f32[1,256], index: 6, kind: input, shape index: {}]
  %s7 = inlined_call_operand.vmem [shape: s32[64,1], index: 7, kind: input, shape index: {}]
  %s8 = inlined_call_operand.vmem [shape: f32[64,1], index: 8, kind: input, shape index: {}]
  %s9 = inlined_call_operand.vmem [shape: s32[64,1], index: 9, kind: input, shape index: {}]
  %s10 = inlined_call_operand.vmem [shape: f32[64,1], index: 10, kind: input, shape index: {}]
  %s11 = inlined_call_operand.hbm [shape: f32[64,128], index: 11, kind: output, shape index: {0}]
  %s12 = inlined_call_operand.hbm [shape: f32[1,1], index: 12, kind: output, shape index: {1}]
  %13 = xla_tuple %s11, %s12
  %s14 = sld [smem:[#allocation0]]
  $region74: #{tpu_custom_call.1} parent=0
    _
  %s16 = ssub.s32 1, %s14
  %s17 = scalar_select 0, %s16, %s14
  $region1: #{tpu_custom_call.1} parent=0
    #allocation5 [shape = 'u8[32768]{0}', space=vmem, size = 0x8000, scoped, tag = 'input window, operand 0, single buffered']
    #allocation6 [shape = 's32[1]{0}', space=sflag, size = 0x4, scoped, tag = 'scoped memory for tpu_custom_call.1']
    #allocation7 [shape = 's32[1]{0}', space=sflag, size = 0x4, scoped, tag = 'scoped memory for tpu_custom_call.1']
    #allocation8 [shape = 'u8[32768]{0}', space=vmem, size = 0x8000, scoped, tag = 'input window, operand 4, single buffered']
    #allocation9 [shape = 's32[1]{0}', space=sflag, size = 0x4, scoped, tag = 'scoped memory for tpu_custom_call.1']
    #allocation10 [shape = 'u8[32768]{0}', space=vmem, size = 0x8000, scoped, tag = 'input window, operand 5, single buffered']
    #allocation11 [shape = 'u8[32768]{0}', space=vmem, size = 0x8000, scoped, tag = 'output window, operand 0, single buffered']
    #allocation12 [shape = 'u8[512]{0}', space=vmem, size = 0x400, scoped, tag = 'output window, operand 1, single buffered']
    #allocation13 [shape = 's32[1]{0}', space=sflag, size = 0x4, scoped, tag = 'scoped memory for tpu_custom_call.1']
    %18 = vsyncpa [#allocation6], 0
    %19 = vsyncpa [#allocation9], 0
    %20 = vsyncpa [#allocation7], 0
    %21 = vsyncpa [#allocation13], 0
    // Predicated region
    $region2: #{tpu_custom_call.1} parent=1 // pred_check
      _
    $region3: #{tpu_custom_call.1} parent=1 // pred_check_branch
      %23 = sbr.rel (0) target = $region5
    $region4: #{tpu_custom_call.1} parent=1 // pred_region
      %s25 = ssub.s32 1024, 1024
      %26 = vsyncadd [#allocation6], %s25
      %s27 = sshll.u32 [#allocation5], 4
      %s28 = int_to_ptr.vmem [resolvable:$true] %s27
      %33 = dma.hbm_to_vmem [thread:$0]  %s0, 1024, %s28, [#allocation6], 128, 128, 8
    $region5: #{tpu_custom_call.1} parent=1 // pred_fallthru
      _
    // Predicated region
    $region6: #{tpu_custom_call.1} parent=1 // pred_check
      _
    $region7: #{tpu_custom_call.1} parent=1 // pred_check_branch
      %35 = sbr.rel (0) target = $region9
    $region8: #{tpu_custom_call.1} parent=1 // pred_region
      _
    $region9: #{tpu_custom_call.1} parent=1 // pred_fallthru
      _
    // Predicated region
    $region10: #{tpu_custom_call.1} parent=1 // pred_check
      _
    $region11: #{tpu_custom_call.1} parent=1 // pred_check_branch
      %37 = sbr.rel (0) target = $region13
    $region12: #{tpu_custom_call.1} parent=1 // pred_region
      _
    $region13: #{tpu_custom_call.1} parent=1 // pred_fallthru
      _
    // Predicated region
    $region14: #{tpu_custom_call.1} parent=1 // pred_check
      _
    $region15: #{tpu_custom_call.1} parent=1 // pred_check_branch
      %39 = sbr.rel (0) target = $region17
    $region16: #{tpu_custom_call.1} parent=1 // pred_region
      _
    $region17: #{tpu_custom_call.1} parent=1 // pred_fallthru
      _
    // Predicated region
    $region18: #{tpu_custom_call.1} parent=1 // pred_check
      _
    $region19: #{tpu_custom_call.1} parent=1 // pred_check_branch
      %41 = sbr.rel (0) target = $region21
    $region20: #{tpu_custom_call.1} parent=1 // pred_region
      %s43 = ssub.s32 1024, 1024
      %44 = vsyncadd [#allocation9], %s43
      %s45 = sshll.u32 [#allocation8], 4
      %s46 = int_to_ptr.vmem [resolvable:$true] %s45
      %51 = dma.hbm_to_vmem [thread:$0]  %s4, 1024, %s46, [#allocation9], 256, 256, 16
    $region21: #{tpu_custom_call.1} parent=1 // pred_fallthru
      _
    // Predicated region
    $region22: #{tpu_custom_call.1} parent=1 // pred_check
      _
    $region23: #{tpu_custom_call.1} parent=1 // pred_check_branch
      %53 = sbr.rel (0) target = $region25
    $region24: #{tpu_custom_call.1} parent=1 // pred_region
      %s55 = ssub.s32 1024, 1024
      %56 = vsyncadd [#allocation9], %s55
      %s57 = sshll.u32 [#allocation10], 4
      %s58 = int_to_ptr.vmem [resolvable:$true] %s57
      %63 = dma.hbm_to_vmem [thread:$0]  %s5, 1024, %s58, [#allocation9], 256, 256, 16
    $region25: #{tpu_custom_call.1} parent=1 // pred_fallthru
      _
    // Predicated region
    $region26: #{tpu_custom_call.1} parent=1 // pred_check
      _
    $region27: #{tpu_custom_call.1} parent=1 // pred_check_branch
      %65 = sbr.rel (0) target = $region29
    $region28: #{tpu_custom_call.1} parent=1 // pred_region
      _
    $region29: #{tpu_custom_call.1} parent=1 // pred_fallthru
      _
    // Predicated region
    $region30: #{tpu_custom_call.1} parent=1 // pred_check
      _
    $region31: #{tpu_custom_call.1} parent=1 // pred_check_branch
      %67 = sbr.rel (0) target = $region33
    $region32: #{tpu_custom_call.1} parent=1 // pred_region
      _
    $region33: #{tpu_custom_call.1} parent=1 // pred_fallthru
      _
    // Predicated region
    $region34: #{tpu_custom_call.1} parent=1 // pred_check
      _
    $region35: #{tpu_custom_call.1} parent=1 // pred_check_branch
      %69 = sbr.rel (0) target = $region37
    $region36: #{tpu_custom_call.1} parent=1 // pred_region
      _
    $region37: #{tpu_custom_call.1} parent=1 // pred_fallthru
      _
    // Predicated region
    $region38: #{tpu_custom_call.1} parent=1 // pred_check
      _
    $region39: #{tpu_custom_call.1} parent=1 // pred_check_branch
      %71 = sbr.rel (0) target = $region41
    $region40: #{tpu_custom_call.1} parent=1 // pred_region
      _
    $region41: #{tpu_custom_call.1} parent=1 // pred_fallthru
      _
    // Predicated region
    $region42: #{tpu_custom_call.1} parent=1 // pred_check
      _
    $region43: #{tpu_custom_call.1} parent=1 // pred_check_branch
      %73 = sbr.rel (0) target = $region45
    $region44: #{tpu_custom_call.1} parent=1 // pred_region
      _
    $region45: #{tpu_custom_call.1} parent=1 // pred_fallthru
      _
    // Predicated region
    $region46: #{tpu_custom_call.1} parent=1 // pred_check
      _
    $region47: #{tpu_custom_call.1} parent=1 // pred_check_branch
      %75 = sbr.rel (0) target = $region49
    $region48: #{tpu_custom_call.1} parent=1 // pred_region
      %76 = dma.done [#allocation6], 1024
    $region49: #{tpu_custom_call.1} parent=1 // pred_fallthru
      _
    // Predicated region
    $region50: #{tpu_custom_call.1} parent=1 // pred_check
      _
    $region51: #{tpu_custom_call.1} parent=1 // pred_check_branch
      %78 = sbr.rel (0) target = $region53
    $region52: #{tpu_custom_call.1} parent=1 // pred_region
      %79 = dma.done [#allocation9], 1024
    $region53: #{tpu_custom_call.1} parent=1 // pred_fallthru
      _
    // Predicated region
    $region54: #{tpu_custom_call.1} parent=1 // pred_check
      _
    $region55: #{tpu_custom_call.1} parent=1 // pred_check_branch
      %81 = sbr.rel (0) target = $region57
    $region56: #{tpu_custom_call.1} parent=1 // pred_region
      %82 = dma.done [#allocation9], 1024
    $region57: #{tpu_custom_call.1} parent=1 // pred_fallthru
      _
    %v83 = vld [vmem:[#allocation5] sm:$0xff]
    %v84 = vld [vmem:[#allocation5 + $0x8] sm:$0xff]
    %v85 = vld [vmem:[#allocation5 + $0x10] sm:$0xff]
    %v86 = vld [vmem:[#allocation5 + $0x18] sm:$0xff]
    %v87 = vld [vmem:[#allocation5 + $0x20] sm:$0xff]
    %v88 = vld [vmem:[#allocation5 + $0x28] sm:$0xff]
    %v89 = vld [vmem:[#allocation5 + $0x30] sm:$0xff]
    %v90 = vld [vmem:[#allocation5 + $0x38] sm:$0xff]
    %v91 = vld [vmem:[%s1] sm:$0xff]
    %v92 = vld [vmem:[%s1 + $0x8] sm:$0xff]
    %v93 = vld [vmem:[%s1 + $0x10] sm:$0xff]
    %v94 = vld [vmem:[%s1 + $0x18] sm:$0xff]
    %v95 = vld [vmem:[%s1 + $0x20] sm:$0xff]
    %v96 = vld [vmem:[%s1 + $0x28] sm:$0xff]
    %v97 = vld [vmem:[%s1 + $0x30] sm:$0xff]
    %v98 = vld [vmem:[%s1 + $0x38] sm:$0xff]
    %v99 = vld [vmem:[%s1 + $0x40] sm:$0xff]
    %v100 = vld [vmem:[%s1 + $0x48] sm:$0xff]
    %v101 = vld [vmem:[%s1 + $0x50] sm:$0xff]
    %v102 = vld [vmem:[%s1 + $0x58] sm:$0xff]
    %v103 = vld [vmem:[%s1 + $0x60] sm:$0xff]
    %v104 = vld [vmem:[%s1 + $0x68] sm:$0xff]
    %v105 = vld [vmem:[%s1 + $0x70] sm:$0xff]
    %v106 = vld [vmem:[%s1 + $0x78] sm:$0xff]
    %v107 = vld [vmem:[%s3] sm:$0x3]
    %v109 = vlaneseq
    %v110 = vshrl.u32 %v109, 7
    %v111 = vsub.s32 0, %v110
    %v112 = vrot.slane %v107, %v111
    %v113 = vlaneseq
    %v114 = vshrl.u32 %v113, 7
    %v115 = vsub.s32 1, %v114
    %v116 = vrot.slane %v107, %v115
    %vm119 = vcmask 523264
    %v121 = vsel %vm119, %v83, 0
    %v124 = vsel %vm119, %v84, 0
    %v127 = vsel %vm119, %v85, 0
    %v130 = vsel %vm119, %v86, 0
    %v133 = vsel %vm119, %v87, 0
    %v136 = vsel %vm119, %v88, 0
    %v139 = vsel %vm119, %v89, 0
    %v142 = vsel %vm119, %v90, 0
    %144 = vmatprep.subr.mxu0 %v92
    %145 = vmatpush1.msra.mxu0 %v91
    %146 = vmatprep.subr.mxu0 %v94
    %147 = vmatpush1.msra.mxu0 %v93
    %148 = vmatprep.subr.mxu0 %v96
    %149 = vmatpush1.msra.mxu0 %v95
    %150 = vmatprep.subr.mxu0 %v98
    %151 = vmatpush1.msra.mxu0 %v97
    %152 = vmatprep.subr.mxu0 %v100
    %153 = vmatpush1.msra.mxu0 %v99
    %154 = vmatprep.subr.mxu0 %v102
    %155 = vmatpush1.msra.mxu0 %v101
    %156 = vmatprep.subr.mxu0 %v104
    %157 = vmatpush1.msra.mxu0 %v103
    %158 = vmatprep.subr.mxu0 %v106
    %159 = vmatpush1.msra.mxu0 %v105
    %160 = vmatprep.subr.mxu0 0.0
    %161 = vmatpush1.msra.mxu0 0.0
    %162 = vmatprep.subr.mxu0 0.0
    %163 = vmatpush1.msra.mxu0 0.0
    %164 = vmatprep.subr.mxu0 0.0
    %165 = vmatpush1.msra.mxu0 0.0
    %166 = vmatprep.subr.mxu0 0.0
    %167 = vmatpush1.msra.mxu0 0.0
    %168 = vmatprep.subr.mxu0 0.0
    %169 = vmatpush1.msra.mxu0 0.0
    %170 = vmatprep.subr.mxu0 0.0
    %171 = vmatpush1.msra.mxu0 0.0
    %172 = vmatprep.subr.mxu0 0.0
    %173 = vmatpush1.msra.mxu0 0.0
    %174 = vmatprep.subr.mxu0 0.0
    %175 = vmatpush1.msra.mxu0 0.0
    %176 = vmatprep.subr.mxu0 0.0
    %177 = vmatpush1.msra.mxu0 0.0
    %178 = vmatprep.subr.mxu0 0.0
    %179 = vmatpush1.msra.mxu0 0.0
    %180 = vmatprep.subr.mxu0 0.0
    %181 = vmatpush1.msra.mxu0 0.0
    %182 = vmatprep.subr.mxu0 0.0
    %183 = vmatpush1.msra.mxu0 0.0
    %184 = vmatprep.subr.mxu0 0.0
    %185 = vmatpush1.msra.mxu0 0.0
    %186 = vmatprep.subr.mxu0 0.0
    %187 = vmatpush1.msra.mxu0 0.0
    %188 = vmatprep.subr.mxu0 0.0
    %189 = vmatpush1.msra.mxu0 0.0
    %190 = vmatprep.subr.mxu0 0.0
    %191 = vmatpush1.msra.mxu0 0.0
    %192 = vmatprep.subr.mxu0 0.0
    %193 = vmatpush1.msra.mxu0 0.0
    %194 = vmatprep.subr.mxu0 0.0
    %195 = vmatpush1.msra.mxu0 0.0
    %196 = vmatprep.subr.mxu0 0.0
    %197 = vmatpush1.msra.mxu0 0.0
    %198 = vmatprep.subr.mxu0 0.0
    %199 = vmatpush1.msra.mxu0 0.0
    %200 = vmatprep.subr.mxu0 0.0
    %201 = vmatpush1.msra.mxu0 0.0
    %202 = vmatprep.subr.mxu0 0.0
    %203 = vmatpush1.msra.mxu0 0.0
    %204 = vmatprep.subr.mxu0 0.0
    %205 = vmatpush1.msra.mxu0 0.0
    %206 = vmatprep.subr.mxu0 0.0
    %207 = vmatpush1.msra.mxu0 0.0
    %208 = vmatprep.mubr.f32.mxu0 0.0
    %209 = vmatmul.mubr.f32.gmra.mrb[0].mxu0 %v121
    %v210 = vpop.f32.mrb[0].mxu0
    %v211 = vadd.f32 %v112, %v210
    %v212 = vpop.f32.mrb[0].mxu0
    %v213 = vadd.f32 %v116, %v212
    %214 = vmatprep.mubr.f32.mxu0 0.0
    %215 = vmatmul.mubr.f32.gmra.mrb[0].mxu0 %v124
    %v216 = vpop.f32.mrb[0].mxu0
    %v217 = vadd.f32 %v112, %v216
    %v218 = vpop.f32.mrb[0].mxu0
    %v219 = vadd.f32 %v116, %v218
    %220 = vmatprep.mubr.f32.mxu0 0.0
    %221 = vmatmul.mubr.f32.gmra.mrb[0].mxu0 %v127
    %v222 = vpop.f32.mrb[0].mxu0
    %v223 = vadd.f32 %v112, %v222
    %v224 = vpop.f32.mrb[0].mxu0
    %v225 = vadd.f32 %v116, %v224
    %226 = vmatprep.mubr.f32.mxu0 0.0
    %227 = vmatmul.mubr.f32.gmra.mrb[0].mxu0 %v130
    %v228 = vpop.f32.mrb[0].mxu0
    %v229 = vadd.f32 %v112, %v228
    %v230 = vpop.f32.mrb[0].mxu0
    %v231 = vadd.f32 %v116, %v230
    %232 = vmatprep.mubr.f32.mxu0 0.0
    %233 = vmatmul.mubr.f32.gmra.mrb[0].mxu0 %v133
    %v234 = vpop.f32.mrb[0].mxu0
    %v235 = vadd.f32 %v112, %v234
    %v236 = vpop.f32.mrb[0].mxu0
    %v237 = vadd.f32 %v116, %v236
    %238 = vmatprep.mubr.f32.mxu0 0.0
    %239 = vmatmul.mubr.f32.gmra.mrb[0].mxu0 %v136
    %v240 = vpop.f32.mrb[0].mxu0
    %v241 = vadd.f32 %v112, %v240
    %v242 = vpop.f32.mrb[0].mxu0
    %v243 = vadd.f32 %v116, %v242
    %244 = vmatprep.mubr.f32.mxu0 0.0
    %245 = vmatmul.mubr.f32.gmra.mrb[0].mxu0 %v139
    %v246 = vpop.f32.mrb[0].mxu0
    %v247 = vadd.f32 %v112, %v246
    %v248 = vpop.f32.mrb[0].mxu0
    %v249 = vadd.f32 %v116, %v248
    %250 = vmatprep.mubr.f32.mxu0 0.0
    %251 = vmatmul.mubr.f32.gmra.mrb[0].mxu0 %v142
    %v252 = vpop.f32.mrb[0].mxu0
    %v253 = vadd.f32 %v112, %v252
    %v254 = vpop.f32.mrb[0].mxu0
    %v255 = vadd.f32 %v116, %v254
    %256 = vdwg.mxu0
    %257 = vst [vmem:[#allocation2] sm:$0xff] %v211
    %258 = vst [vmem:[#allocation2 + $0x8] sm:$0xff] %v213
    %259 = vst [vmem:[#allocation2 + $0x10] sm:$0xff] %v217
    %260 = vst [vmem:[#allocation2 + $0x18] sm:$0xff] %v219
    %261 = vst [vmem:[#allocation2 + $0x20] sm:$0xff] %v223
    %262 = vst [vmem:[#allocation2 + $0x28] sm:$0xff] %v225
    %263 = vst [vmem:[#allocation2 + $0x30] sm:$0xff] %v229
    %264 = vst [vmem:[#allocation2 + $0x38] sm:$0xff] %v231
    %265 = vst [vmem:[#allocation2 + $0x40] sm:$0xff] %v235
    %266 = vst [vmem:[#allocation2 + $0x48] sm:$0xff] %v237
    %267 = vst [vmem:[#allocation2 + $0x50] sm:$0xff] %v241
    %268 = vst [vmem:[#allocation2 + $0x58] sm:$0xff] %v243
    %269 = vst [vmem:[#allocation2 + $0x60] sm:$0xff] %v247
    %270 = vst [vmem:[#allocation2 + $0x68] sm:$0xff] %v249
    %271 = vst [vmem:[#allocation2 + $0x70] sm:$0xff] %v253
    %272 = vst [vmem:[#allocation2 + $0x78] sm:$0xff] %v255
    %v273 = vld [vmem:[%s2] sm:$0xff]
    %v274 = vld [vmem:[%s2 + $0x8] sm:$0xff]
    %v275 = vld [vmem:[%s2 + $0x10] sm:$0xff]
    %v276 = vld [vmem:[%s2 + $0x18] sm:$0xff]
    %v277 = vld [vmem:[%s2 + $0x20] sm:$0xff]
    %v278 = vld [vmem:[%s2 + $0x28] sm:$0xff]
    %v279 = vld [vmem:[%s2 + $0x30] sm:$0xff]
    %v280 = vld [vmem:[%s2 + $0x38] sm:$0xff]
    %v281 = vld [vmem:[%s2 + $0x40] sm:$0xff]
    %v282 = vld [vmem:[%s2 + $0x48] sm:$0xff]
    %v283 = vld [vmem:[%s2 + $0x50] sm:$0xff]
    %v284 = vld [vmem:[%s2 + $0x58] sm:$0xff]
    %v285 = vld [vmem:[%s2 + $0x60] sm:$0xff]
    %v286 = vld [vmem:[%s2 + $0x68] sm:$0xff]
    %v287 = vld [vmem:[%s2 + $0x70] sm:$0xff]
    %v288 = vld [vmem:[%s2 + $0x78] sm:$0xff]
    %s289 = smul.u32 0, 2
    %s290 = smul.addr %s289, 8
    %s291 = scalar_lea.vmem [#allocation2], %s290
    %v292 = vld [vmem:[%s291] sm:$0xff]
    %v293 = vld [vmem:[%s291 + $0x8] sm:$0xff]
    %v295 = vsel %vm119, 0.0, 0
    %297 = vmatprep.subr.mxu0 %v274
    %298 = vmatpush1.msra.mxu0 %v273
    %299 = vmatprep.subr.mxu0 %v276
    %300 = vmatpush1.msra.mxu0 %v275
    %301 = vmatprep.subr.mxu0 %v278
    %302 = vmatpush1.msra.mxu0 %v277
    %303 = vmatprep.subr.mxu0 %v280
    %304 = vmatpush1.msra.mxu0 %v279
    %305 = vmatprep.subr.mxu0 %v282
    %306 = vmatpush1.msra.mxu0 %v281
    %307 = vmatprep.subr.mxu0 %v284
    %308 = vmatpush1.msra.mxu0 %v283
    %309 = vmatprep.subr.mxu0 %v286
    %310 = vmatpush1.msra.mxu0 %v285
    %311 = vmatprep.subr.mxu0 %v288
    %312 = vmatpush1.msra.mxu0 %v287
    %313 = vmatprep.subr.mxu0 0.0
    %314 = vmatpush1.msra.mxu0 0.0
    %315 = vmatprep.subr.mxu0 0.0
    %316 = vmatpush1.msra.mxu0 0.0
    %317 = vmatprep.subr.mxu0 0.0
    %318 = vmatpush1.msra.mxu0 0.0
    %319 = vmatprep.subr.mxu0 0.0
    %320 = vmatpush1.msra.mxu0 0.0
    %321 = vmatprep.subr.mxu0 0.0
    %322 = vmatpush1.msra.mxu0 0.0
    %323 = vmatprep.subr.mxu0 0.0
    %324 = vmatpush1.msra.mxu0 0.0
    %325 = vmatprep.subr.mxu0 0.0
    %326 = vmatpush1.msra.mxu0 0.0
    %327 = vmatprep.subr.mxu0 0.0
    %328 = vmatpush1.msra.mxu0 0.0
    %329 = vmatprep.subr.mxu0 0.0
    %330 = vmatpush1.msra.mxu0 0.0
    %331 = vmatprep.subr.mxu0 0.0
    %332 = vmatpush1.msra.mxu0 0.0
    %333 = vmatprep.subr.mxu0 0.0
    %334 = vmatpush1.msra.mxu0 0.0
    %335 = vmatprep.subr.mxu0 0.0
    %336 = vmatpush1.msra.mxu0 0.0
    %337 = vmatprep.subr.mxu0 0.0
    %338 = vmatpush1.msra.mxu0 0.0
    %339 = vmatprep.subr.mxu0 0.0
    %340 = vmatpush1.msra.mxu0 0.0
    %341 = vmatprep.subr.mxu0 0.0
    %342 = vmatpush1.msra.mxu0 0.0
    %343 = vmatprep.subr.mxu0 0.0
    %344 = vmatpush1.msra.mxu0 0.0
    %345 = vmatprep.subr.mxu0 0.0
    %346 = vmatpush1.msra.mxu0 0.0
    %347 = vmatprep.subr.mxu0 0.0
    %348 = vmatpush1.msra.mxu0 0.0
    %349 = vmatprep.subr.mxu0 0.0
    %350 = vmatpush1.msra.mxu0 0.0
    %351 = vmatprep.subr.mxu0 0.0
    %352 = vmatpush1.msra.mxu0 0.0
    %353 = vmatprep.subr.mxu0 0.0
    %354 = vmatpush1.msra.mxu0 0.0
    %355 = vmatprep.subr.mxu0 0.0
    %356 = vmatpush1.msra.mxu0 0.0
    %357 = vmatprep.subr.mxu0 0.0
    %358 = vmatpush1.msra.mxu0 0.0
    %359 = vmatprep.subr.mxu0 0.0
    %360 = vmatpush1.msra.mxu0 0.0
    %361 = vmatprep.mubr.f32.mxu0 0.0
    %362 = vmatmul.mubr.f32.gmra.mrb[0].mxu0 %v295
    %v363 = vpop.f32.mrb[0].mxu0
    %v364 = vadd.f32 0.0, %v363
    %v365 = vpop.f32.mrb[0].mxu0
    %v366 = vadd.f32 0.0, %v365
    %367 = vdwg.mxu0
    %v368 = vadd.f32 %v292, %v364
    %v369 = vadd.f32 %v293, %v366
    %v370 = vxor.u32 %v368, 2147483648
    %v371 = vxor.u32 %v369, 2147483648
    %v372 = vmul.f32 %v370, 1.442695
    %v373 = vpow.pop %v372
    %v374 = vmul.f32 %v371, 1.442695
    %v375 = vpow.pop %v374
    %v376 = vadd.f32 %v373, 1.0
    %v377 = vadd.f32 %v375, 1.0
    %v378 = vrcp.pop %v376
    %v379 = vmul.f32 1.0, %v378
    %v380 = vrcp.pop %v377
    %v381 = vmul.f32 1.0, %v380
    %v382 = vtanh.pop %v369
    %v383 = vmul.f32 %v379, 0.0
    %385 = vrot.lane.b32.xlu0 %v382, 64
    %v386 = vpop.permute.xlu0 %385
    %v388 = vmul.f32 %v379, %v386
    %390 = vrot.lane.b32.xlu0 %v388, 64
    %v391 = vpop.permute.xlu0 %390
    %v393 = vadd.f32 %v383, %v391
    %v394 = vtanh.pop %v393
    %396 = vrot.lane.b32.xlu0 %v394, 64
    %v397 = vpop.permute.xlu0 %396
    %v399 = vmul.f32 %v381, %v397
    %vm400 = vcmask 261120
    %401 = vst.msk [vmem:[#allocation3] sm:$0xff] %vm400, %v399
    %403 = vrot.lane.b32.xlu0 %v399, 96
    %v404 = vpop.permute.xlu0 %403
    %s406 = scalar_lea.vmem [#allocation4], 56
    %407 = vst.msk [vmem:[%s406] sm:$0xff] %vm400, %v404
    %s408 = smul.u32 1, 2
    %s409 = smul.addr %s408, 8
    %s410 = scalar_lea.vmem [#allocation2], %s409
    %v411 = vld [vmem:[%s410] sm:$0xff]
    %v412 = vld [vmem:[%s410 + $0x8] sm:$0xff]
    %v413 = vsel %vm119, %v399, 0
    %415 = vmatprep.subr.mxu0 %v274
    %416 = vmatpush1.msra.mxu0 %v273
    %417 = vmatprep.subr.mxu0 %v276
    %418 = vmatpush1.msra.mxu0 %v275
    %419 = vmatprep.subr.mxu0 %v278
    %420 = vmatpush1.msra.mxu0 %v277
    %421 = vmatprep.subr.mxu0 %v280
    %422 = vmatpush1.msra.mxu0 %v279
    %423 = vmatprep.subr.mxu0 %v282
    %424 = vmatpush1.msra.mxu0 %v281
    %425 = vmatprep.subr.mxu0 %v284
    %426 = vmatpush1.msra.mxu0 %v283
    %427 = vmatprep.subr.mxu0 %v286
    %428 = vmatpush1.msra.mxu0 %v285
    %429 = vmatprep.subr.mxu0 %v288
    %430 = vmatpush1.msra.mxu0 %v287
    %431 = vmatprep.subr.mxu0 0.0
    %432 = vmatpush1.msra.mxu0 0.0
    %433 = vmatprep.subr.mxu0 0.0
    %434 = vmatpush1.msra.mxu0 0.0
    %435 = vmatprep.subr.mxu0 0.0
    %436 = vmatpush1.msra.mxu0 0.0
    %437 = vmatprep.subr.mxu0 0.0
    %438 = vmatpush1.msra.mxu0 0.0
    %439 = vmatprep.subr.mxu0 0.0
    %440 = vmatpush1.msra.mxu0 0.0
    %441 = vmatprep.subr.mxu0 0.0
    %442 = vmatpush1.msra.mxu0 0.0
    %443 = vmatprep.subr.mxu0 0.0
    %444 = vmatpush1.msra.mxu0 0.0
    %445 = vmatprep.subr.mxu0 0.0
    %446 = vmatpush1.msra.mxu0 0.0
    %447 = vmatprep.subr.mxu0 0.0
    %448 = vmatpush1.msra.mxu0 0.0
    %449 = vmatprep.subr.mxu0 0.0
    %450 = vmatpush1.msra.mxu0 0.0
    %451 = vmatprep.subr.mxu0 0.0
    %452 = vmatpush1.msra.mxu0 0.0
    %453 = vmatprep.subr.mxu0 0.0
    %454 = vmatpush1.msra.mxu0 0.0
    %455 = vmatprep.subr.mxu0 0.0
    %456 = vmatpush1.msra.mxu0 0.0
    %457 = vmatprep.subr.mxu0 0.0
    %458 = vmatpush1.msra.mxu0 0.0
    %459 = vmatprep.subr.mxu0 0.0
    %460 = vmatpush1.msra.mxu0 0.0
    %461 = vmatprep.subr.mxu0 0.0
    %462 = vmatpush1.msra.mxu0 0.0
    %463 = vmatprep.subr.mxu0 0.0
    %464 = vmatpush1.msra.mxu0 0.0
    %465 = vmatprep.subr.mxu0 0.0
    %466 = vmatpush1.msra.mxu0 0.0
    %467 = vmatprep.subr.mxu0 0.0
    %468 = vmatpush1.msra.mxu0 0.0
    %469 = vmatprep.subr.mxu0 0.0
    %470 = vmatpush1.msra.mxu0 0.0
    %471 = vmatprep.subr.mxu0 0.0
    %472 = vmatpush1.msra.mxu0 0.0
    %473 = vmatprep.subr.mxu0 0.0
    %474 = vmatpush1.msra.mxu0 0.0
    %475 = vmatprep.subr.mxu0 0.0
    %476 = vmatpush1.msra.mxu0 0.0
    %477 = vmatprep.subr.mxu0 0.0
    %478 = vmatpush1.msra.mxu0 0.0
    %479 = vmatprep.mubr.f32.mxu0 0.0
    %480 = vmatmul.mubr.f32.gmra.mrb[0].mxu0 %v413
    %v481 = vpop.f32.mrb[0].mxu0
    %v482 = vadd.f32 0.0, %v481
    %v483 = vpop.f32.mrb[0].mxu0
    %v484 = vadd.f32 0.0, %v483
    %485 = vdwg.mxu0
    %v486 = vadd.f32 %v411, %v482
    %v487 = vadd.f32 %v412, %v484
    %v488 = vxor.u32 %v486, 2147483648
    %v489 = vxor.u32 %v487, 2147483648
    %v490 = vmul.f32 %v488, 1.442695
    %v491 = vpow.pop %v490
    %v492 = vmul.f32 %v489, 1.442695
    %v493 = vpow.pop %v492
    %v494 = vadd.f32 %v491, 1.0
    %v495 = vadd.f32 %v493, 1.0
    %v496 = vrcp.pop %v494
    %v497 = vmul.f32 1.0, %v496
    %v498 = vrcp.pop %v495
    %v499 = vmul.f32 1.0, %v498
    %v500 = vtanh.pop %v487
    %v501 = vmul.f32 %v497, %v393
    %503 = vrot.lane.b32.xlu0 %v500, 64
    %v504 = vpop.permute.xlu0 %503
    %v506 = vmul.f32 %v497, %v504
    %508 = vrot.lane.b32.xlu0 %v506, 64
    %v509 = vpop.permute.xlu0 %508
    %v511 = vadd.f32 %v501, %v509
    %v512 = vtanh.pop %v511
    %514 = vrot.lane.b32.xlu0 %v512, 64
    %v515 = vpop.permute.xlu0 %514
    %v517 = vmul.f32 %v499, %v515
    %s518 = scalar_lea.vmem [#allocation3], 8
    %519 = vst.msk [vmem:[%s518] sm:$0xff] %vm400, %v517
    %521 = vrot.lane.b32.xlu0 %v517, 96
    %v522 = vpop.permute.xlu0 %521
    %s524 = scalar_lea.vmem [#allocation4], 48
    %525 = vst.msk [vmem:[%s524] sm:$0xff] %vm400, %v522
    %s526 = smul.u32 2, 2
    %s527 = smul.addr %s526, 8
    %s528 = scalar_lea.vmem [#allocation2], %s527
    %v529 = vld [vmem:[%s528] sm:$0xff]
    %v530 = vld [vmem:[%s528 + $0x8] sm:$0xff]
    %v531 = vsel %vm119, %v517, 0
    %533 = vmatprep.subr.mxu0 %v274
    %534 = vmatpush1.msra.mxu0 %v273
    %535 = vmatprep.subr.mxu0 %v276
    %536 = vmatpush1.msra.mxu0 %v275
    %537 = vmatprep.subr.mxu0 %v278
    %538 = vmatpush1.msra.mxu0 %v277
    %539 = vmatprep.subr.mxu0 %v280
    %540 = vmatpush1.msra.mxu0 %v279
    %541 = vmatprep.subr.mxu0 %v282
    %542 = vmatpush1.msra.mxu0 %v281
    %543 = vmatprep.subr.mxu0 %v284
    %544 = vmatpush1.msra.mxu0 %v283
    %545 = vmatprep.subr.mxu0 %v286
    %546 = vmatpush1.msra.mxu0 %v285
    %547 = vmatprep.subr.mxu0 %v288
    %548 = vmatpush1.msra.mxu0 %v287
    %549 = vmatprep.subr.mxu0 0.0
    %550 = vmatpush1.msra.mxu0 0.0
    %551 = vmatprep.subr.mxu0 0.0
    %552 = vmatpush1.msra.mxu0 0.0
    %553 = vmatprep.subr.mxu0 0.0
    %554 = vmatpush1.msra.mxu0 0.0
    %555 = vmatprep.subr.mxu0 0.0
    %556 = vmatpush1.msra.mxu0 0.0
    %557 = vmatprep.subr.mxu0 0.0
    %558 = vmatpush1.msra.mxu0 0.0
    %559 = vmatprep.subr.mxu0 0.0
    %560 = vmatpush1.msra.mxu0 0.0
    %561 = vmatprep.subr.mxu0 0.0
    %562 = vmatpush1.msra.mxu0 0.0
    %563 = vmatprep.subr.mxu0 0.0
    %564 = vmatpush1.msra.mxu0 0.0
    %565 = vmatprep.subr.mxu0 0.0
    %566 = vmatpush1.msra.mxu0 0.0
    %567 = vmatprep.subr.mxu0 0.0
    %568 = vmatpush1.msra.mxu0 0.0
    %569 = vmatprep.subr.mxu0 0.0
    %570 = vmatpush1.msra.mxu0 0.0
    %571 = vmatprep.subr.mxu0 0.0
    %572 = vmatpush1.msra.mxu0 0.0
    %573 = vmatprep.subr.mxu0 0.0
    %574 = vmatpush1.msra.mxu0 0.0
    %575 = vmatprep.subr.mxu0 0.0
    %576 = vmatpush1.msra.mxu0 0.0
    %577 = vmatprep.subr.mxu0 0.0
    %578 = vmatpush1.msra.mxu0 0.0
    %579 = vmatprep.subr.mxu0 0.0
    %580 = vmatpush1.msra.mxu0 0.0
    %581 = vmatprep.subr.mxu0 0.0
    %582 = vmatpush1.msra.mxu0 0.0
    %583 = vmatprep.subr.mxu0 0.0
    %584 = vmatpush1.msra.mxu0 0.0
    %585 = vmatprep.subr.mxu0 0.0
    %586 = vmatpush1.msra.mxu0 0.0
    %587 = vmatprep.subr.mxu0 0.0
    %588 = vmatpush1.msra.mxu0 0.0
    %589 = vmatprep.subr.mxu0 0.0
    %590 = vmatpush1.msra.mxu0 0.0
    %591 = vmatprep.subr.mxu0 0.0
    %592 = vmatpush1.msra.mxu0 0.0
    %593 = vmatprep.subr.mxu0 0.0
    %594 = vmatpush1.msra.mxu0 0.0
    %595 = vmatprep.subr.mxu0 0.0
    %596 = vmatpush1.msra.mxu0 0.0
    %597 = vmatprep.mubr.f32.mxu0 0.0
    %598 = vmatmul.mubr.f32.gmra.mrb[0].mxu0 %v531
    %v599 = vpop.f32.mrb[0].mxu0
    %v600 = vadd.f32 0.0, %v599
    %v601 = vpop.f32.mrb[0].mxu0
    %v602 = vadd.f32 0.0, %v601
    %603 = vdwg.mxu0
    %v604 = vadd.f32 %v529, %v600
    %v605 = vadd.f32 %v530, %v602
    %v606 = vxor.u32 %v604, 2147483648
    %v607 = vxor.u32 %v605, 2147483648
    %v608 = vmul.f32 %v606, 1.442695
    %v609 = vpow.pop %v608
    %v610 = vmul.f32 %v607, 1.442695
    %v611 = vpow.pop %v610
    %v612 = vadd.f32 %v609, 1.0
    %v613 = vadd.f32 %v611, 1.0
    %v614 = vrcp.pop %v612
    %v615 = vmul.f32 1.0, %v614
    %v616 = vrcp.pop %v613
    %v617 = vmul.f32 1.0, %v616
    %v618 = vtanh.pop %v605
    %v619 = vmul.f32 %v615, %v511
    %621 = vrot.lane.b32.xlu0 %v618, 64
    %v622 = vpop.permute.xlu0 %621
    %v624 = vmul.f32 %v615, %v622
    %626 = vrot.lane.b32.xlu0 %v624, 64
    %v627 = vpop.permute.xlu0 %626
    %v629 = vadd.f32 %v619, %v627
    %v630 = vtanh.pop %v629
    %632 = vrot.lane.b32.xlu0 %v630, 64
    %v633 = vpop.permute.xlu0 %632
    %v635 = vmul.f32 %v617, %v633
    %s636 = scalar_lea.vmem [#allocation3], 16
    %637 = vst.msk [vmem:[%s636] sm:$0xff] %vm400, %v635
    %639 = vrot.lane.b32.xlu0 %v635, 96
    %v640 = vpop.permute.xlu0 %639
    %s642 = scalar_lea.vmem [#allocation4], 40
    %643 = vst.msk [vmem:[%s642] sm:$0xff] %vm400, %v640
    %s644 = smul.u32 3, 2
    %s645 = smul.addr %s644, 8
    %s646 = scalar_lea.vmem [#allocation2], %s645
    %v647 = vld [vmem:[%s646] sm:$0xff]
    %v648 = vld [vmem:[%s646 + $0x8] sm:$0xff]
    %v649 = vsel %vm119, %v635, 0
    %651 = vmatprep.subr.mxu0 %v274
    %652 = vmatpush1.msra.mxu0 %v273
    %653 = vmatprep.subr.mxu0 %v276
    %654 = vmatpush1.msra.mxu0 %v275
    %655 = vmatprep.subr.mxu0 %v278
    %656 = vmatpush1.msra.mxu0 %v277
    %657 = vmatprep.subr.mxu0 %v280
    %658 = vmatpush1.msra.mxu0 %v279
    %659 = vmatprep.subr.mxu0 %v282
    %660 = vmatpush1.msra.mxu0 %v281
    %661 = vmatprep.subr.mxu0 %v284
    %662 = vmatpush1.msra.mxu0 %v283
    %663 = vmatprep.subr.mxu0 %v286
    %664 = vmatpush1.msra.mxu0 %v285
    %665 = vmatprep.subr.mxu0 %v288
    %666 = vmatpush1.msra.mxu0 %v287
    %667 = vmatprep.subr.mxu0 0.0
    %668 = vmatpush1.msra.mxu0 0.0
    %669 = vmatprep.subr.mxu0 0.0
    %670 = vmatpush1.msra.mxu0 0.0
    %671 = vmatprep.subr.mxu0 0.0
    %672 = vmatpush1.msra.mxu0 0.0
    %673 = vmatprep.subr.mxu0 0.0
    %674 = vmatpush1.msra.mxu0 0.0
    %675 = vmatprep.subr.mxu0 0.0
    %676 = vmatpush1.msra.mxu0 0.0
    %677 = vmatprep.subr.mxu0 0.0
    %678 = vmatpush1.msra.mxu0 0.0
    %679 = vmatprep.subr.mxu0 0.0
    %680 = vmatpush1.msra.mxu0 0.0
    %681 = vmatprep.subr.mxu0 0.0
    %682 = vmatpush1.msra.mxu0 0.0
    %683 = vmatprep.subr.mxu0 0.0
    %684 = vmatpush1.msra.mxu0 0.0
    %685 = vmatprep.subr.mxu0 0.0
    %686 = vmatpush1.msra.mxu0 0.0
    %687 = vmatprep.subr.mxu0 0.0
    %688 = vmatpush1.msra.mxu0 0.0
    %689 = vmatprep.subr.mxu0 0.0
    %690 = vmatpush1.msra.mxu0 0.0
    %691 = vmatprep.subr.mxu0 0.0
    %692 = vmatpush1.msra.mxu0 0.0
    %693 = vmatprep.subr.mxu0 0.0
    %694 = vmatpush1.msra.mxu0 0.0
    %695 = vmatprep.subr.mxu0 0.0
    %696 = vmatpush1.msra.mxu0 0.0
    %697 = vmatprep.subr.mxu0 0.0
    %698 = vmatpush1.msra.mxu0 0.0
    %699 = vmatprep.subr.mxu0 0.0
    %700 = vmatpush1.msra.mxu0 0.0
    %701 = vmatprep.subr.mxu0 0.0
    %702 = vmatpush1.msra.mxu0 0.0
    %703 = vmatprep.subr.mxu0 0.0
    %704 = vmatpush1.msra.mxu0 0.0
    %705 = vmatprep.subr.mxu0 0.0
    %706 = vmatpush1.msra.mxu0 0.0
    %707 = vmatprep.subr.mxu0 0.0
    %708 = vmatpush1.msra.mxu0 0.0
    %709 = vmatprep.subr.mxu0 0.0
    %710 = vmatpush1.msra.mxu0 0.0
    %711 = vmatprep.subr.mxu0 0.0
    %712 = vmatpush1.msra.mxu0 0.0
    %713 = vmatprep.subr.mxu0 0.0
    %714 = vmatpush1.msra.mxu0 0.0
    %715 = vmatprep.mubr.f32.mxu0 0.0
    %716 = vmatmul.mubr.f32.gmra.mrb[0].mxu0 %v649
    %v717 = vpop.f32.mrb[0].mxu0
    %v718 = vadd.f32 0.0, %v717
    %v719 = vpop.f32.mrb[0].mxu0
    %v720 = vadd.f32 0.0, %v719
    %721 = vdwg.mxu0
    %v722 = vadd.f32 %v647, %v718
    %v723 = vadd.f32 %v648, %v720
    %v724 = vxor.u32 %v722, 2147483648
    %v725 = vxor.u32 %v723, 2147483648
    %v726 = vmul.f32 %v724, 1.442695
    %v727 = vpow.pop %v726
    %v728 = vmul.f32 %v725, 1.442695
    %v729 = vpow.pop %v728
    %v730 = vadd.f32 %v727, 1.0
    %v731 = vadd.f32 %v729, 1.0
    %v732 = vrcp.pop %v730
    %v733 = vmul.f32 1.0, %v732
    %v734 = vrcp.pop %v731
    %v735 = vmul.f32 1.0, %v734
    %v736 = vtanh.pop %v723
    %v737 = vmul.f32 %v733, %v629
    %739 = vrot.lane.b32.xlu0 %v736, 64
    %v740 = vpop.permute.xlu0 %739
    %v742 = vmul.f32 %v733, %v740
    %744 = vrot.lane.b32.xlu0 %v742, 64
    %v745 = vpop.permute.xlu0 %744
    %v747 = vadd.f32 %v737, %v745
    %v748 = vtanh.pop %v747
    %750 = vrot.lane.b32.xlu0 %v748, 64
    %v751 = vpop.permute.xlu0 %750
    %v753 = vmul.f32 %v735, %v751
    %s754 = scalar_lea.vmem [#allocation3], 24
    %755 = vst.msk [vmem:[%s754] sm:$0xff] %vm400, %v753
    %757 = vrot.lane.b32.xlu0 %v753, 96
    %v758 = vpop.permute.xlu0 %757
    %s760 = scalar_lea.vmem [#allocation4], 32
    %761 = vst.msk [vmem:[%s760] sm:$0xff] %vm400, %v758
    %s762 = smul.u32 4, 2
    %s763 = smul.addr %s762, 8
    %s764 = scalar_lea.vmem [#allocation2], %s763
    %v765 = vld [vmem:[%s764] sm:$0xff]
    %v766 = vld [vmem:[%s764 + $0x8] sm:$0xff]
    %v767 = vsel %vm119, %v753, 0
    %769 = vmatprep.subr.mxu0 %v274
    %770 = vmatpush1.msra.mxu0 %v273
    %771 = vmatprep.subr.mxu0 %v276
    %772 = vmatpush1.msra.mxu0 %v275
    %773 = vmatprep.subr.mxu0 %v278
    %774 = vmatpush1.msra.mxu0 %v277
    %775 = vmatprep.subr.mxu0 %v280
    %776 = vmatpush1.msra.mxu0 %v279
    %777 = vmatprep.subr.mxu0 %v282
    %778 = vmatpush1.msra.mxu0 %v281
    %779 = vmatprep.subr.mxu0 %v284
    %780 = vmatpush1.msra.mxu0 %v283
    %781 = vmatprep.subr.mxu0 %v286
    %782 = vmatpush1.msra.mxu0 %v285
    %783 = vmatprep.subr.mxu0 %v288
    %784 = vmatpush1.msra.mxu0 %v287
    %785 = vmatprep.subr.mxu0 0.0
    %786 = vmatpush1.msra.mxu0 0.0
    %787 = vmatprep.subr.mxu0 0.0
    %788 = vmatpush1.msra.mxu0 0.0
    %789 = vmatprep.subr.mxu0 0.0
    %790 = vmatpush1.msra.mxu0 0.0
    %791 = vmatprep.subr.mxu0 0.0
    %792 = vmatpush1.msra.mxu0 0.0
    %793 = vmatprep.subr.mxu0 0.0
    %794 = vmatpush1.msra.mxu0 0.0
    %795 = vmatprep.subr.mxu0 0.0
    %796 = vmatpush1.msra.mxu0 0.0
    %797 = vmatprep.subr.mxu0 0.0
    %798 = vmatpush1.msra.mxu0 0.0
    %799 = vmatprep.subr.mxu0 0.0
    %800 = vmatpush1.msra.mxu0 0.0
    %801 = vmatprep.subr.mxu0 0.0
    %802 = vmatpush1.msra.mxu0 0.0
    %803 = vmatprep.subr.mxu0 0.0
    %804 = vmatpush1.msra.mxu0 0.0
    %805 = vmatprep.subr.mxu0 0.0
    %806 = vmatpush1.msra.mxu0 0.0
    %807 = vmatprep.subr.mxu0 0.0
    %808 = vmatpush1.msra.mxu0 0.0
    %809 = vmatprep.subr.mxu0 0.0
    %810 = vmatpush1.msra.mxu0 0.0
    %811 = vmatprep.subr.mxu0 0.0
    %812 = vmatpush1.msra.mxu0 0.0
    %813 = vmatprep.subr.mxu0 0.0
    %814 = vmatpush1.msra.mxu0 0.0
    %815 = vmatprep.subr.mxu0 0.0
    %816 = vmatpush1.msra.mxu0 0.0
    %817 = vmatprep.subr.mxu0 0.0
    %818 = vmatpush1.msra.mxu0 0.0
    %819 = vmatprep.subr.mxu0 0.0
    %820 = vmatpush1.msra.mxu0 0.0
    %821 = vmatprep.subr.mxu0 0.0
    %822 = vmatpush1.msra.mxu0 0.0
    %823 = vmatprep.subr.mxu0 0.0
    %824 = vmatpush1.msra.mxu0 0.0
    %825 = vmatprep.subr.mxu0 0.0
    %826 = vmatpush1.msra.mxu0 0.0
    %827 = vmatprep.subr.mxu0 0.0
    %828 = vmatpush1.msra.mxu0 0.0
    %829 = vmatprep.subr.mxu0 0.0
    %830 = vmatpush1.msra.mxu0 0.0
    %831 = vmatprep.subr.mxu0 0.0
    %832 = vmatpush1.msra.mxu0 0.0
    %833 = vmatprep.mubr.f32.mxu0 0.0
    %834 = vmatmul.mubr.f32.gmra.mrb[0].mxu0 %v767
    %v835 = vpop.f32.mrb[0].mxu0
    %v836 = vadd.f32 0.0, %v835
    %v837 = vpop.f32.mrb[0].mxu0
    %v838 = vadd.f32 0.0, %v837
    %839 = vdwg.mxu0
    %v840 = vadd.f32 %v765, %v836
    %v841 = vadd.f32 %v766, %v838
    %v842 = vxor.u32 %v840, 2147483648
    %v843 = vxor.u32 %v841, 2147483648
    %v844 = vmul.f32 %v842, 1.442695
    %v845 = vpow.pop %v844
    %v846 = vmul.f32 %v843, 1.442695
    %v847 = vpow.pop %v846
    %v848 = vadd.f32 %v845, 1.0
    %v849 = vadd.f32 %v847, 1.0
    %v850 = vrcp.pop %v848
    %v851 = vmul.f32 1.0, %v850
    %v852 = vrcp.pop %v849
    %v853 = vmul.f32 1.0, %v852
    %v854 = vtanh.pop %v841
    %v855 = vmul.f32 %v851, %v747
    %857 = vrot.lane.b32.xlu0 %v854, 64
    %v858 = vpop.permute.xlu0 %857
    %v860 = vmul.f32 %v851, %v858
    %862 = vrot.lane.b32.xlu0 %v860, 64
    %v863 = vpop.permute.xlu0 %862
    %v865 = vadd.f32 %v855, %v863
    %v866 = vtanh.pop %v865
    %868 = vrot.lane.b32.xlu0 %v866, 64
    %v869 = vpop.permute.xlu0 %868
    %v871 = vmul.f32 %v853, %v869
    %s872 = scalar_lea.vmem [#allocation3], 32
    %873 = vst.msk [vmem:[%s872] sm:$0xff] %vm400, %v871
    %875 = vrot.lane.b32.xlu0 %v871, 96
    %v876 = vpop.permute.xlu0 %875
    %s878 = scalar_lea.vmem [#allocation4], 24
    %879 = vst.msk [vmem:[%s878] sm:$0xff] %vm400, %v876
    %s880 = smul.u32 5, 2
    %s881 = smul.addr %s880, 8
    %s882 = scalar_lea.vmem [#allocation2], %s881
    %v883 = vld [vmem:[%s882] sm:$0xff]
    %v884 = vld [vmem:[%s882 + $0x8] sm:$0xff]
    %v885 = vsel %vm119, %v871, 0
    %887 = vmatprep.subr.mxu0 %v274
    %888 = vmatpush1.msra.mxu0 %v273
    %889 = vmatprep.subr.mxu0 %v276
    %890 = vmatpush1.msra.mxu0 %v275
    %891 = vmatprep.subr.mxu0 %v278
    %892 = vmatpush1.msra.mxu0 %v277
    %893 = vmatprep.subr.mxu0 %v280
    %894 = vmatpush1.msra.mxu0 %v279
    %895 = vmatprep.subr.mxu0 %v282
    %896 = vmatpush1.msra.mxu0 %v281
    %897 = vmatprep.subr.mxu0 %v284
    %898 = vmatpush1.msra.mxu0 %v283
    %899 = vmatprep.subr.mxu0 %v286
    %900 = vmatpush1.msra.mxu0 %v285
    %901 = vmatprep.subr.mxu0 %v288
    %902 = vmatpush1.msra.mxu0 %v287
    %903 = vmatprep.subr.mxu0 0.0
    %904 = vmatpush1.msra.mxu0 0.0
    %905 = vmatprep.subr.mxu0 0.0
    %906 = vmatpush1.msra.mxu0 0.0
    %907 = vmatprep.subr.mxu0 0.0
    %908 = vmatpush1.msra.mxu0 0.0
    %909 = vmatprep.subr.mxu0 0.0
    %910 = vmatpush1.msra.mxu0 0.0
    %911 = vmatprep.subr.mxu0 0.0
    %912 = vmatpush1.msra.mxu0 0.0
    %913 = vmatprep.subr.mxu0 0.0
    %914 = vmatpush1.msra.mxu0 0.0
    %915 = vmatprep.subr.mxu0 0.0
    %916 = vmatpush1.msra.mxu0 0.0
    %917 = vmatprep.subr.mxu0 0.0
    %918 = vmatpush1.msra.mxu0 0.0
    %919 = vmatprep.subr.mxu0 0.0
    %920 = vmatpush1.msra.mxu0 0.0
    %921 = vmatprep.subr.mxu0 0.0
    %922 = vmatpush1.msra.mxu0 0.0
    %923 = vmatprep.subr.mxu0 0.0
    %924 = vmatpush1.msra.mxu0 0.0
    %925 = vmatprep.subr.mxu0 0.0
    %926 = vmatpush1.msra.mxu0 0.0
    %927 = vmatprep.subr.mxu0 0.0
    %928 = vmatpush1.msra.mxu0 0.0
    %929 = vmatprep.subr.mxu0 0.0
    %930 = vmatpush1.msra.mxu0 0.0
    %931 = vmatprep.subr.mxu0 0.0
    %932 = vmatpush1.msra.mxu0 0.0
    %933 = vmatprep.subr.mxu0 0.0
    %934 = vmatpush1.msra.mxu0 0.0
    %935 = vmatprep.subr.mxu0 0.0
    %936 = vmatpush1.msra.mxu0 0.0
    %937 = vmatprep.subr.mxu0 0.0
    %938 = vmatpush1.msra.mxu0 0.0
    %939 = vmatprep.subr.mxu0 0.0
    %940 = vmatpush1.msra.mxu0 0.0
    %941 = vmatprep.subr.mxu0 0.0
    %942 = vmatpush1.msra.mxu0 0.0
    %943 = vmatprep.subr.mxu0 0.0
    %944 = vmatpush1.msra.mxu0 0.0
    %945 = vmatprep.subr.mxu0 0.0
    %946 = vmatpush1.msra.mxu0 0.0
    %947 = vmatprep.subr.mxu0 0.0
    %948 = vmatpush1.msra.mxu0 0.0
    %949 = vmatprep.subr.mxu0 0.0
    %950 = vmatpush1.msra.mxu0 0.0
    %951 = vmatprep.mubr.f32.mxu0 0.0
    %952 = vmatmul.mubr.f32.gmra.mrb[0].mxu0 %v885
    %v953 = vpop.f32.mrb[0].mxu0
    %v954 = vadd.f32 0.0, %v953
    %v955 = vpop.f32.mrb[0].mxu0
    %v956 = vadd.f32 0.0, %v955
    %957 = vdwg.mxu0
    %v958 = vadd.f32 %v883, %v954
    %v959 = vadd.f32 %v884, %v956
    %v960 = vxor.u32 %v958, 2147483648
    %v961 = vxor.u32 %v959, 2147483648
    %v962 = vmul.f32 %v960, 1.442695
    %v963 = vpow.pop %v962
    %v964 = vmul.f32 %v961, 1.442695
    %v965 = vpow.pop %v964
    %v966 = vadd.f32 %v963, 1.0
    %v967 = vadd.f32 %v965, 1.0
    %v968 = vrcp.pop %v966
    %v969 = vmul.f32 1.0, %v968
    %v970 = vrcp.pop %v967
    %v971 = vmul.f32 1.0, %v970
    %v972 = vtanh.pop %v959
    %v973 = vmul.f32 %v969, %v865
    %975 = vrot.lane.b32.xlu0 %v972, 64
    %v976 = vpop.permute.xlu0 %975
    %v978 = vmul.f32 %v969, %v976
    %980 = vrot.lane.b32.xlu0 %v978, 64
    %v981 = vpop.permute.xlu0 %980
    %v983 = vadd.f32 %v973, %v981
    %v984 = vtanh.pop %v983
    %986 = vrot.lane.b32.xlu0 %v984, 64
    %v987 = vpop.permute.xlu0 %986
    %v989 = vmul.f32 %v971, %v987
    %s990 = scalar_lea.vmem [#allocation3], 40
    %991 = vst.msk [vmem:[%s990] sm:$0xff] %vm400, %v989
    %993 = vrot.lane.b32.xlu0 %v989, 96
    %v994 = vpop.permute.xlu0 %993
    %s996 = scalar_lea.vmem [#allocation4], 16
    %997 = vst.msk [vmem:[%s996] sm:$0xff] %vm400, %v994
    %s998 = smul.u32 6, 2
    %s999 = smul.addr %s998, 8
    %s1000 = scalar_lea.vmem [#allocation2], %s999
    %v1001 = vld [vmem:[%s1000] sm:$0xff]
    %v1002 = vld [vmem:[%s1000 + $0x8] sm:$0xff]
    %v1003 = vsel %vm119, %v989, 0
    %1005 = vmatprep.subr.mxu0 %v274
    %1006 = vmatpush1.msra.mxu0 %v273
    %1007 = vmatprep.subr.mxu0 %v276
    %1008 = vmatpush1.msra.mxu0 %v275
    %1009 = vmatprep.subr.mxu0 %v278
    %1010 = vmatpush1.msra.mxu0 %v277
    %1011 = vmatprep.subr.mxu0 %v280
    %1012 = vmatpush1.msra.mxu0 %v279
    %1013 = vmatprep.subr.mxu0 %v282
    %1014 = vmatpush1.msra.mxu0 %v281
    %1015 = vmatprep.subr.mxu0 %v284
    %1016 = vmatpush1.msra.mxu0 %v283
    %1017 = vmatprep.subr.mxu0 %v286
    %1018 = vmatpush1.msra.mxu0 %v285
    %1019 = vmatprep.subr.mxu0 %v288
    %1020 = vmatpush1.msra.mxu0 %v287
    %1021 = vmatprep.subr.mxu0 0.0
    %1022 = vmatpush1.msra.mxu0 0.0
    %1023 = vmatprep.subr.mxu0 0.0
    %1024 = vmatpush1.msra.mxu0 0.0
    %1025 = vmatprep.subr.mxu0 0.0
    %1026 = vmatpush1.msra.mxu0 0.0
    %1027 = vmatprep.subr.mxu0 0.0
    %1028 = vmatpush1.msra.mxu0 0.0
    %1029 = vmatprep.subr.mxu0 0.0
    %1030 = vmatpush1.msra.mxu0 0.0
    %1031 = vmatprep.subr.mxu0 0.0
    %1032 = vmatpush1.msra.mxu0 0.0
    %1033 = vmatprep.subr.mxu0 0.0
    %1034 = vmatpush1.msra.mxu0 0.0
    %1035 = vmatprep.subr.mxu0 0.0
    %1036 = vmatpush1.msra.mxu0 0.0
    %1037 = vmatprep.subr.mxu0 0.0
    %1038 = vmatpush1.msra.mxu0 0.0
    %1039 = vmatprep.subr.mxu0 0.0
    %1040 = vmatpush1.msra.mxu0 0.0
    %1041 = vmatprep.subr.mxu0 0.0
    %1042 = vmatpush1.msra.mxu0 0.0
    %1043 = vmatprep.subr.mxu0 0.0
    %1044 = vmatpush1.msra.mxu0 0.0
    %1045 = vmatprep.subr.mxu0 0.0
    %1046 = vmatpush1.msra.mxu0 0.0
    %1047 = vmatprep.subr.mxu0 0.0
    %1048 = vmatpush1.msra.mxu0 0.0
    %1049 = vmatprep.subr.mxu0 0.0
    %1050 = vmatpush1.msra.mxu0 0.0
    %1051 = vmatprep.subr.mxu0 0.0
    %1052 = vmatpush1.msra.mxu0 0.0
    %1053 = vmatprep.subr.mxu0 0.0
    %1054 = vmatpush1.msra.mxu0 0.0
    %1055 = vmatprep.subr.mxu0 0.0
    %1056 = vmatpush1.msra.mxu0 0.0
    %1057 = vmatprep.subr.mxu0 0.0
    %1058 = vmatpush1.msra.mxu0 0.0
    %1059 = vmatprep.subr.mxu0 0.0
    %1060 = vmatpush1.msra.mxu0 0.0
    %1061 = vmatprep.subr.mxu0 0.0
    %1062 = vmatpush1.msra.mxu0 0.0
    %1063 = vmatprep.subr.mxu0 0.0
    %1064 = vmatpush1.msra.mxu0 0.0
    %1065 = vmatprep.subr.mxu0 0.0
    %1066 = vmatpush1.msra.mxu0 0.0
    %1067 = vmatprep.subr.mxu0 0.0
    %1068 = vmatpush1.msra.mxu0 0.0
    %1069 = vmatprep.mubr.f32.mxu0 0.0
    %1070 = vmatmul.mubr.f32.gmra.mrb[0].mxu0 %v1003
    %v1071 = vpop.f32.mrb[0].mxu0
    %v1072 = vadd.f32 0.0, %v1071
    %v1073 = vpop.f32.mrb[0].mxu0
    %v1074 = vadd.f32 0.0, %v1073
    %1075 = vdwg.mxu0
    %v1076 = vadd.f32 %v1001, %v1072
    %v1077 = vadd.f32 %v1002, %v1074
    %v1078 = vxor.u32 %v1076, 2147483648
    %v1079 = vxor.u32 %v1077, 2147483648
    %v1080 = vmul.f32 %v1078, 1.442695
    %v1081 = vpow.pop %v1080
    %v1082 = vmul.f32 %v1079, 1.442695
    %v1083 = vpow.pop %v1082
    %v1084 = vadd.f32 %v1081, 1.0
    %v1085 = vadd.f32 %v1083, 1.0
    %v1086 = vrcp.pop %v1084
    %v1087 = vmul.f32 1.0, %v1086
    %v1088 = vrcp.pop %v1085
    %v1089 = vmul.f32 1.0, %v1088
    %v1090 = vtanh.pop %v1077
    %v1091 = vmul.f32 %v1087, %v983
    %1093 = vrot.lane.b32.xlu0 %v1090, 64
    %v1094 = vpop.permute.xlu0 %1093
    %v1096 = vmul.f32 %v1087, %v1094
    %1098 = vrot.lane.b32.xlu0 %v1096, 64
    %v1099 = vpop.permute.xlu0 %1098
    %v1101 = vadd.f32 %v1091, %v1099
    %v1102 = vtanh.pop %v1101
    %1104 = vrot.lane.b32.xlu0 %v1102, 64
    %v1105 = vpop.permute.xlu0 %1104
    %v1107 = vmul.f32 %v1089, %v1105
    %s1108 = scalar_lea.vmem [#allocation3], 48
    %1109 = vst.msk [vmem:[%s1108] sm:$0xff] %vm400, %v1107
    %1111 = vrot.lane.b32.xlu0 %v1107, 96
    %v1112 = vpop.permute.xlu0 %1111
    %s1114 = scalar_lea.vmem [#allocation4], 8
    %1115 = vst.msk [vmem:[%s1114] sm:$0xff] %vm400, %v1112
    %s1116 = smul.u32 7, 2
    %s1117 = smul.addr %s1116, 8
    %s1118 = scalar_lea.vmem [#allocation2], %s1117
    %v1119 = vld [vmem:[%s1118] sm:$0xff]
    %v1120 = vld [vmem:[%s1118 + $0x8] sm:$0xff]
    %v1121 = vsel %vm119, %v1107, 0
    %1123 = vmatprep.subr.mxu0 %v274
    %1124 = vmatpush1.msra.mxu0 %v273
    %1125 = vmatprep.subr.mxu0 %v276
    %1126 = vmatpush1.msra.mxu0 %v275
    %1127 = vmatprep.subr.mxu0 %v278
    %1128 = vmatpush1.msra.mxu0 %v277
    %1129 = vmatprep.subr.mxu0 %v280
    %1130 = vmatpush1.msra.mxu0 %v279
    %1131 = vmatprep.subr.mxu0 %v282
    %1132 = vmatpush1.msra.mxu0 %v281
    %1133 = vmatprep.subr.mxu0 %v284
    %1134 = vmatpush1.msra.mxu0 %v283
    %1135 = vmatprep.subr.mxu0 %v286
    %1136 = vmatpush1.msra.mxu0 %v285
    %1137 = vmatprep.subr.mxu0 %v288
    %1138 = vmatpush1.msra.mxu0 %v287
    %1139 = vmatprep.subr.mxu0 0.0
    %1140 = vmatpush1.msra.mxu0 0.0
    %1141 = vmatprep.subr.mxu0 0.0
    %1142 = vmatpush1.msra.mxu0 0.0
    %1143 = vmatprep.subr.mxu0 0.0
    %1144 = vmatpush1.msra.mxu0 0.0
    %1145 = vmatprep.subr.mxu0 0.0
    %1146 = vmatpush1.msra.mxu0 0.0
    %1147 = vmatprep.subr.mxu0 0.0
    %1148 = vmatpush1.msra.mxu0 0.0
    %1149 = vmatprep.subr.mxu0 0.0
    %1150 = vmatpush1.msra.mxu0 0.0
    %1151 = vmatprep.subr.mxu0 0.0
    %1152 = vmatpush1.msra.mxu0 0.0
    %1153 = vmatprep.subr.mxu0 0.0
    %1154 = vmatpush1.msra.mxu0 0.0
    %1155 = vmatprep.subr.mxu0 0.0
    %1156 = vmatpush1.msra.mxu0 0.0
    %1157 = vmatprep.subr.mxu0 0.0
    %1158 = vmatpush1.msra.mxu0 0.0
    %1159 = vmatprep.subr.mxu0 0.0
    %1160 = vmatpush1.msra.mxu0 0.0
    %1161 = vmatprep.subr.mxu0 0.0
    %1162 = vmatpush1.msra.mxu0 0.0
    %1163 = vmatprep.subr.mxu0 0.0
    %1164 = vmatpush1.msra.mxu0 0.0
    %1165 = vmatprep.subr.mxu0 0.0
    %1166 = vmatpush1.msra.mxu0 0.0
    %1167 = vmatprep.subr.mxu0 0.0
    %1168 = vmatpush1.msra.mxu0 0.0
    %1169 = vmatprep.subr.mxu0 0.0
    %1170 = vmatpush1.msra.mxu0 0.0
    %1171 = vmatprep.subr.mxu0 0.0
    %1172 = vmatpush1.msra.mxu0 0.0
    %1173 = vmatprep.subr.mxu0 0.0
    %1174 = vmatpush1.msra.mxu0 0.0
    %1175 = vmatprep.subr.mxu0 0.0
    %1176 = vmatpush1.msra.mxu0 0.0
    %1177 = vmatprep.subr.mxu0 0.0
    %1178 = vmatpush1.msra.mxu0 0.0
    %1179 = vmatprep.subr.mxu0 0.0
    %1180 = vmatpush1.msra.mxu0 0.0
    %1181 = vmatprep.subr.mxu0 0.0
    %1182 = vmatpush1.msra.mxu0 0.0
    %1183 = vmatprep.subr.mxu0 0.0
    %1184 = vmatpush1.msra.mxu0 0.0
    %1185 = vmatprep.subr.mxu0 0.0
    %1186 = vmatpush1.msra.mxu0 0.0
    %1187 = vmatprep.mubr.f32.mxu0 0.0
    %1188 = vmatmul.mubr.f32.gmra.mrb[0].mxu0 %v1121
    %v1189 = vpop.f32.mrb[0].mxu0
    %v1190 = vadd.f32 0.0, %v1189
    %v1191 = vpop.f32.mrb[0].mxu0
    %v1192 = vadd.f32 0.0, %v1191
    %1193 = vdwg.mxu0
    %v1194 = vadd.f32 %v1119, %v1190
    %v1195 = vadd.f32 %v1120, %v1192
    %v1196 = vxor.u32 %v1194, 2147483648
    %v1197 = vxor.u32 %v1195, 2147483648
    %v1198 = vmul.f32 %v1196, 1.442695
    %v1199 = vpow.pop %v1198
    %v1200 = vmul.f32 %v1197, 1.442695
    %v1201 = vpow.pop %v1200
    %v1202 = vadd.f32 %v1199, 1.0
    %v1203 = vadd.f32 %v1201, 1.0
    %v1204 = vrcp.pop %v1202
    %v1205 = vmul.f32 1.0, %v1204
    %v1206 = vrcp.pop %v1203
    %v1207 = vmul.f32 1.0, %v1206
    %v1208 = vtanh.pop %v1195
    %v1209 = vmul.f32 %v1205, %v1101
    %1211 = vrot.lane.b32.xlu0 %v1208, 64
    %v1212 = vpop.permute.xlu0 %1211
    %v1214 = vmul.f32 %v1205, %v1212
    %1216 = vrot.lane.b32.xlu0 %v1214, 64
    %v1217 = vpop.permute.xlu0 %1216
    %v1219 = vadd.f32 %v1209, %v1217
    %v1220 = vtanh.pop %v1219
    %1222 = vrot.lane.b32.xlu0 %v1220, 64
    %v1223 = vpop.permute.xlu0 %1222
    %v1225 = vmul.f32 %v1207, %v1223
    %s1226 = scalar_lea.vmem [#allocation3], 56
    %1227 = vst.msk [vmem:[%s1226] sm:$0xff] %vm400, %v1225
    %1229 = vrot.lane.b32.xlu0 %v1225, 96
    %v1230 = vpop.permute.xlu0 %1229
    %1232 = vst.msk [vmem:[#allocation4] sm:$0xff] %vm400, %v1230
    %v1233 = vld [vmem:[#allocation3] sm:$0xff]
    %v1234 = vld [vmem:[#allocation3 + $0x8] sm:$0xff]
    %v1235 = vld [vmem:[#allocation3 + $0x10] sm:$0xff]
    %v1236 = vld [vmem:[#allocation3 + $0x18] sm:$0xff]
    %v1237 = vld [vmem:[#allocation3 + $0x20] sm:$0xff]
    %v1238 = vld [vmem:[#allocation3 + $0x28] sm:$0xff]
    %v1239 = vld [vmem:[#allocation3 + $0x30] sm:$0xff]
    %v1240 = vld [vmem:[#allocation3 + $0x38] sm:$0xff]
    %v1241 = vld [vmem:[#allocation8] sm:$0xff]
    %v1242 = vld [vmem:[#allocation8 + $0x8] sm:$0xff]
    %v1243 = vld [vmem:[#allocation8 + $0x10] sm:$0xff]
    %v1244 = vld [vmem:[#allocation8 + $0x18] sm:$0xff]
    %v1245 = vld [vmem:[#allocation8 + $0x20] sm:$0xff]
    %v1246 = vld [vmem:[#allocation8 + $0x28] sm:$0xff]
    %v1247 = vld [vmem:[#allocation8 + $0x30] sm:$0xff]
    %v1248 = vld [vmem:[#allocation8 + $0x38] sm:$0xff]
    %v1249 = vld [vmem:[#allocation4] sm:$0xff]
    %v1250 = vld [vmem:[#allocation4 + $0x8] sm:$0xff]
    %v1251 = vld [vmem:[#allocation4 + $0x10] sm:$0xff]
    %v1252 = vld [vmem:[#allocation4 + $0x18] sm:$0xff]
    %v1253 = vld [vmem:[#allocation4 + $0x20] sm:$0xff]
    %v1254 = vld [vmem:[#allocation4 + $0x28] sm:$0xff]
    %v1255 = vld [vmem:[#allocation4 + $0x30] sm:$0xff]
    %v1256 = vld [vmem:[#allocation4 + $0x38] sm:$0xff]
    %v1257 = vld [vmem:[#allocation10] sm:$0xff]
    %v1258 = vld [vmem:[#allocation10 + $0x8] sm:$0xff]
    %v1259 = vld [vmem:[#allocation10 + $0x10] sm:$0xff]
    %v1260 = vld [vmem:[#allocation10 + $0x18] sm:$0xff]
    %v1261 = vld [vmem:[#allocation10 + $0x20] sm:$0xff]
    %v1262 = vld [vmem:[#allocation10 + $0x28] sm:$0xff]
    %v1263 = vld [vmem:[#allocation10 + $0x30] sm:$0xff]
    %v1264 = vld [vmem:[#allocation10 + $0x38] sm:$0xff]
    %v1266 = vsel %vm400, %v1249, 0
    %v1269 = vsel %vm400, %v1250, 0
    %v1272 = vsel %vm400, %v1251, 0
    %v1275 = vsel %vm400, %v1252, 0
    %v1278 = vsel %vm400, %v1253, 0
    %v1281 = vsel %vm400, %v1254, 0
    %v1284 = vsel %vm400, %v1255, 0
    %v1287 = vsel %vm400, %v1256, 0
    %1289 = vmatprep.subr.mxu0 %v1258
    %1290 = vmatpush1.msra.mxu0 %v1257
    %1291 = vmatprep.subr.mxu0 %v1260
    %1292 = vmatpush1.msra.mxu0 %v1259
    %1293 = vmatprep.subr.mxu0 %v1262
    %1294 = vmatpush1.msra.mxu0 %v1261
    %1295 = vmatprep.subr.mxu0 %v1264
    %1296 = vmatpush1.msra.mxu0 %v1263
    %1297 = vmatprep.subr.mxu0 0.0
    %1298 = vmatpush1.msra.mxu0 0.0
    %1299 = vmatprep.subr.mxu0 0.0
    %1300 = vmatpush1.msra.mxu0 0.0
    %1301 = vmatprep.subr.mxu0 0.0
    %1302 = vmatpush1.msra.mxu0 0.0
    %1303 = vmatprep.subr.mxu0 0.0
    %1304 = vmatpush1.msra.mxu0 0.0
    %1305 = vmatprep.subr.mxu0 0.0
    %1306 = vmatpush1.msra.mxu0 0.0
    %1307 = vmatprep.subr.mxu0 0.0
    %1308 = vmatpush1.msra.mxu0 0.0
    %1309 = vmatprep.subr.mxu0 0.0
    %1310 = vmatpush1.msra.mxu0 0.0
    %1311 = vmatprep.subr.mxu0 0.0
    %1312 = vmatpush1.msra.mxu0 0.0
    %1313 = vmatprep.subr.mxu0 0.0
    %1314 = vmatpush1.msra.mxu0 0.0
    %1315 = vmatprep.subr.mxu0 0.0
    %1316 = vmatpush1.msra.mxu0 0.0
    %1317 = vmatprep.subr.mxu0 0.0
    %1318 = vmatpush1.msra.mxu0 0.0
    %1319 = vmatprep.subr.mxu0 0.0
    %1320 = vmatpush1.msra.mxu0 0.0
    %1321 = vmatprep.subr.mxu0 0.0
    %1322 = vmatpush1.msra.mxu0 0.0
    %1323 = vmatprep.subr.mxu0 0.0
    %1324 = vmatpush1.msra.mxu0 0.0
    %1325 = vmatprep.subr.mxu0 0.0
    %1326 = vmatpush1.msra.mxu0 0.0
    %1327 = vmatprep.subr.mxu0 0.0
    %1328 = vmatpush1.msra.mxu0 0.0
    %1329 = vmatprep.subr.mxu0 0.0
    %1330 = vmatpush1.msra.mxu0 0.0
    %1331 = vmatprep.subr.mxu0 0.0
    %1332 = vmatpush1.msra.mxu0 0.0
    %1333 = vmatprep.subr.mxu0 0.0
    %1334 = vmatpush1.msra.mxu0 0.0
    %1335 = vmatprep.subr.mxu0 0.0
    %1336 = vmatpush1.msra.mxu0 0.0
    %1337 = vmatprep.subr.mxu0 0.0
    %1338 = vmatpush1.msra.mxu0 0.0
    %1339 = vmatprep.subr.mxu0 0.0
    %1340 = vmatpush1.msra.mxu0 0.0
    %1341 = vmatprep.subr.mxu0 0.0
    %1342 = vmatpush1.msra.mxu0 0.0
    %1343 = vmatprep.subr.mxu0 0.0
    %1344 = vmatpush1.msra.mxu0 0.0
    %1345 = vmatprep.subr.mxu0 0.0
    %1346 = vmatpush1.msra.mxu0 0.0
    %1347 = vmatprep.subr.mxu0 0.0
    %1348 = vmatpush1.msra.mxu0 0.0
    %1349 = vmatprep.subr.mxu0 0.0
    %1350 = vmatpush1.msra.mxu0 0.0
    %1351 = vmatprep.subr.mxu0 0.0
    %1352 = vmatpush1.msra.mxu0 0.0
    %1353 = vmatprep.mubr.f32.mxu0 0.0
    %1354 = vmatmul.mubr.f32.gmra.mrb[0].mxu0 %v1266
    %v1355 = vpop.f32.mrb[0].mxu0
    %v1356 = vadd.f32 0.0, %v1355
    %v1357 = vpop.f32.mrb[0].mxu0
    %v1358 = vadd.f32 0.0, %v1357
    %1359 = vmatprep.mubr.f32.mxu0 0.0
    %1360 = vmatmul.mubr.f32.gmra.mrb[0].mxu0 %v1269
    %v1361 = vpop.f32.mrb[0].mxu0
    %v1362 = vadd.f32 0.0, %v1361
    %v1363 = vpop.f32.mrb[0].mxu0
    %v1364 = vadd.f32 0.0, %v1363
    %1365 = vmatprep.mubr.f32.mxu0 0.0
    %1366 = vmatmul.mubr.f32.gmra.mrb[0].mxu0 %v1272
    %v1367 = vpop.f32.mrb[0].mxu0
    %v1368 = vadd.f32 0.0, %v1367
    %v1369 = vpop.f32.mrb[0].mxu0
    %v1370 = vadd.f32 0.0, %v1369
    %1371 = vmatprep.mubr.f32.mxu0 0.0
    %1372 = vmatmul.mubr.f32.gmra.mrb[0].mxu0 %v1275
    %v1373 = vpop.f32.mrb[0].mxu0
    %v1374 = vadd.f32 0.0, %v1373
    %v1375 = vpop.f32.mrb[0].mxu0
    %v1376 = vadd.f32 0.0, %v1375
    %1377 = vmatprep.mubr.f32.mxu0 0.0
    %1378 = vmatmul.mubr.f32.gmra.mrb[0].mxu0 %v1278
    %v1379 = vpop.f32.mrb[0].mxu0
    %v1380 = vadd.f32 0.0, %v1379
    %v1381 = vpop.f32.mrb[0].mxu0
    %v1382 = vadd.f32 0.0, %v1381
    %1383 = vmatprep.mubr.f32.mxu0 0.0
    %1384 = vmatmul.mubr.f32.gmra.mrb[0].mxu0 %v1281
    %v1385 = vpop.f32.mrb[0].mxu0
    %v1386 = vadd.f32 0.0, %v1385
    %v1387 = vpop.f32.mrb[0].mxu0
    %v1388 = vadd.f32 0.0, %v1387
    %1389 = vmatprep.mubr.f32.mxu0 0.0
    %1390 = vmatmul.mubr.f32.gmra.mrb[0].mxu0 %v1284
    %v1391 = vpop.f32.mrb[0].mxu0
    %v1392 = vadd.f32 0.0, %v1391
    %v1393 = vpop.f32.mrb[0].mxu0
    %v1394 = vadd.f32 0.0, %v1393
    %1395 = vmatprep.mubr.f32.mxu0 0.0
    %1396 = vmatmul.mubr.f32.gmra.mrb[0].mxu0 %v1287
    %v1397 = vpop.f32.mrb[0].mxu0
    %v1398 = vadd.f32 0.0, %v1397
    %v1399 = vpop.f32.mrb[0].mxu0
    %v1400 = vadd.f32 0.0, %v1399
    %1401 = vdwg.mxu0
    %v1403 = vsel %vm400, %v1233, 0
    %v1406 = vsel %vm400, %v1234, 0
    %v1409 = vsel %vm400, %v1235, 0
    %v1412 = vsel %vm400, %v1236, 0
    %v1415 = vsel %vm400, %v1237, 0
    %v1418 = vsel %vm400, %v1238, 0
    %v1421 = vsel %vm400, %v1239, 0
    %v1424 = vsel %vm400, %v1240, 0
    %1426 = vmatprep.subr.mxu0 %v1242
    %1427 = vmatpush1.msra.mxu0 %v1241
    %1428 = vmatprep.subr.mxu0 %v1244
    %1429 = vmatpush1.msra.mxu0 %v1243
    %1430 = vmatprep.subr.mxu0 %v1246
    %1431 = vmatpush1.msra.mxu0 %v1245
    %1432 = vmatprep.subr.mxu0 %v1248
    %1433 = vmatpush1.msra.mxu0 %v1247
    %1434 = vmatprep.subr.mxu0 0.0
    %1435 = vmatpush1.msra.mxu0 0.0
    %1436 = vmatprep.subr.mxu0 0.0
    %1437 = vmatpush1.msra.mxu0 0.0
    %1438 = vmatprep.subr.mxu0 0.0
    %1439 = vmatpush1.msra.mxu0 0.0
    %1440 = vmatprep.subr.mxu0 0.0
    %1441 = vmatpush1.msra.mxu0 0.0
    %1442 = vmatprep.subr.mxu0 0.0
    %1443 = vmatpush1.msra.mxu0 0.0
    %1444 = vmatprep.subr.mxu0 0.0
    %1445 = vmatpush1.msra.mxu0 0.0
    %1446 = vmatprep.subr.mxu0 0.0
    %1447 = vmatpush1.msra.mxu0 0.0
    %1448 = vmatprep.subr.mxu0 0.0
    %1449 = vmatpush1.msra.mxu0 0.0
    %1450 = vmatprep.subr.mxu0 0.0
    %1451 = vmatpush1.msra.mxu0 0.0
    %1452 = vmatprep.subr.mxu0 0.0
    %1453 = vmatpush1.msra.mxu0 0.0
    %1454 = vmatprep.subr.mxu0 0.0
    %1455 = vmatpush1.msra.mxu0 0.0
    %1456 = vmatprep.subr.mxu0 0.0
    %1457 = vmatpush1.msra.mxu0 0.0
    %1458 = vmatprep.subr.mxu0 0.0
    %1459 = vmatpush1.msra.mxu0 0.0
    %1460 = vmatprep.subr.mxu0 0.0
    %1461 = vmatpush1.msra.mxu0 0.0
    %1462 = vmatprep.subr.mxu0 0.0
    %1463 = vmatpush1.msra.mxu0 0.0
    %1464 = vmatprep.subr.mxu0 0.0
    %1465 = vmatpush1.msra.mxu0 0.0
    %1466 = vmatprep.subr.mxu0 0.0
    %1467 = vmatpush1.msra.mxu0 0.0
    %1468 = vmatprep.subr.mxu0 0.0
    %1469 = vmatpush1.msra.mxu0 0.0
    %1470 = vmatprep.subr.mxu0 0.0
    %1471 = vmatpush1.msra.mxu0 0.0
    %1472 = vmatprep.subr.mxu0 0.0
    %1473 = vmatpush1.msra.mxu0 0.0
    %1474 = vmatprep.subr.mxu0 0.0
    %1475 = vmatpush1.msra.mxu0 0.0
    %1476 = vmatprep.subr.mxu0 0.0
    %1477 = vmatpush1.msra.mxu0 0.0
    %1478 = vmatprep.subr.mxu0 0.0
    %1479 = vmatpush1.msra.mxu0 0.0
    %1480 = vmatprep.subr.mxu0 0.0
    %1481 = vmatpush1.msra.mxu0 0.0
    %1482 = vmatprep.subr.mxu0 0.0
    %1483 = vmatpush1.msra.mxu0 0.0
    %1484 = vmatprep.subr.mxu0 0.0
    %1485 = vmatpush1.msra.mxu0 0.0
    %1486 = vmatprep.subr.mxu0 0.0
    %1487 = vmatpush1.msra.mxu0 0.0
    %1488 = vmatprep.subr.mxu0 0.0
    %1489 = vmatpush1.msra.mxu0 0.0
    %1490 = vmatprep.mubr.f32.mxu0 0.0
    %1491 = vmatmul.mubr.f32.gmra.mrb[0].mxu0 %v1403
    %v1492 = vpop.f32.mrb[0].mxu0
    %v1493 = vadd.f32 %v1356, %v1492
    %v1494 = vpop.f32.mrb[0].mxu0
    %v1495 = vadd.f32 %v1358, %v1494
    %1496 = vmatprep.mubr.f32.mxu0 0.0
    %1497 = vmatmul.mubr.f32.gmra.mrb[0].mxu0 %v1406
    %v1498 = vpop.f32.mrb[0].mxu0
    %v1499 = vadd.f32 %v1362, %v1498
    %v1500 = vpop.f32.mrb[0].mxu0
    %v1501 = vadd.f32 %v1364, %v1500
    %1502 = vmatprep.mubr.f32.mxu0 0.0
    %1503 = vmatmul.mubr.f32.gmra.mrb[0].mxu0 %v1409
    %v1504 = vpop.f32.mrb[0].mxu0
    %v1505 = vadd.f32 %v1368, %v1504
    %v1506 = vpop.f32.mrb[0].mxu0
    %v1507 = vadd.f32 %v1370, %v1506
    %1508 = vmatprep.mubr.f32.mxu0 0.0
    %1509 = vmatmul.mubr.f32.gmra.mrb[0].mxu0 %v1412
    %v1510 = vpop.f32.mrb[0].mxu0
    %v1511 = vadd.f32 %v1374, %v1510
    %v1512 = vpop.f32.mrb[0].mxu0
    %v1513 = vadd.f32 %v1376, %v1512
    %1514 = vmatprep.mubr.f32.mxu0 0.0
    %1515 = vmatmul.mubr.f32.gmra.mrb[0].mxu0 %v1415
    %v1516 = vpop.f32.mrb[0].mxu0
    %v1517 = vadd.f32 %v1380, %v1516
    %v1518 = vpop.f32.mrb[0].mxu0
    %v1519 = vadd.f32 %v1382, %v1518
    %1520 = vmatprep.mubr.f32.mxu0 0.0
    %1521 = vmatmul.mubr.f32.gmra.mrb[0].mxu0 %v1418
    %v1522 = vpop.f32.mrb[0].mxu0
    %v1523 = vadd.f32 %v1386, %v1522
    %v1524 = vpop.f32.mrb[0].mxu0
    %v1525 = vadd.f32 %v1388, %v1524
    %1526 = vmatprep.mubr.f32.mxu0 0.0
    %1527 = vmatmul.mubr.f32.gmra.mrb[0].mxu0 %v1421
    %v1528 = vpop.f32.mrb[0].mxu0
    %v1529 = vadd.f32 %v1392, %v1528
    %v1530 = vpop.f32.mrb[0].mxu0
    %v1531 = vadd.f32 %v1394, %v1530
    %1532 = vmatprep.mubr.f32.mxu0 0.0
    %1533 = vmatmul.mubr.f32.gmra.mrb[0].mxu0 %v1424
    %v1534 = vpop.f32.mrb[0].mxu0
    %v1535 = vadd.f32 %v1398, %v1534
    %v1536 = vpop.f32.mrb[0].mxu0
    %v1537 = vadd.f32 %v1400, %v1536
    %1538 = vdwg.mxu0
    %v1539 = vld [vmem:[%s6] sm:$0x3]
    %v1541 = vlaneseq
    %v1542 = vshrl.u32 %v1541, 7
    %v1543 = vsub.s32 0, %v1542
    %v1544 = vrot.slane %v1539, %v1543
    %v1545 = vlaneseq
    %v1546 = vshrl.u32 %v1545, 7
    %v1547 = vsub.s32 1, %v1546
    %v1548 = vrot.slane %v1539, %v1547
    %v1551 = vadd.f32 %v1493, %v1544
    %v1552 = vadd.f32 %v1495, %v1548
    %v1553 = vadd.f32 %v1499, %v1544
    %v1554 = vadd.f32 %v1501, %v1548
    %v1555 = vadd.f32 %v1505, %v1544
    %v1556 = vadd.f32 %v1507, %v1548
    %v1557 = vadd.f32 %v1511, %v1544
    %v1558 = vadd.f32 %v1513, %v1548
    %v1559 = vadd.f32 %v1517, %v1544
    %v1560 = vadd.f32 %v1519, %v1548
    %v1561 = vadd.f32 %v1523, %v1544
    %v1562 = vadd.f32 %v1525, %v1548
    %v1563 = vadd.f32 %v1529, %v1544
    %v1564 = vadd.f32 %v1531, %v1548
    %v1565 = vadd.f32 %v1535, %v1544
    %v1566 = vadd.f32 %v1537, %v1548
    %1567 = vst [vmem:[#allocation11] sm:$0xff] %v1551
    %1568 = vst [vmem:[#allocation11 + $0x8] sm:$0xff] %v1553
    %1569 = vst [vmem:[#allocation11 + $0x10] sm:$0xff] %v1555
    %1570 = vst [vmem:[#allocation11 + $0x18] sm:$0xff] %v1557
    %1571 = vst [vmem:[#allocation11 + $0x20] sm:$0xff] %v1559
    %1572 = vst [vmem:[#allocation11 + $0x28] sm:$0xff] %v1561
    %1573 = vst [vmem:[#allocation11 + $0x30] sm:$0xff] %v1563
    %1574 = vst [vmem:[#allocation11 + $0x38] sm:$0xff] %v1565
    %v1575 = vld [vmem:[%s7] sm:$0xff]
    %v1576 = vld [vmem:[%s7 + $0x8] sm:$0xff]
    %v1577 = vld [vmem:[%s7 + $0x10] sm:$0xff]
    %v1578 = vld [vmem:[%s7 + $0x18] sm:$0xff]
    %v1579 = vld [vmem:[%s7 + $0x20] sm:$0xff]
    %v1580 = vld [vmem:[%s7 + $0x28] sm:$0xff]
    %v1581 = vld [vmem:[%s7 + $0x30] sm:$0xff]
    %v1582 = vld [vmem:[%s7 + $0x38] sm:$0xff]
    %v1583 = vld [vmem:[%s8] sm:$0xff]
    %v1584 = vld [vmem:[%s8 + $0x8] sm:$0xff]
    %v1585 = vld [vmem:[%s8 + $0x10] sm:$0xff]
    %v1586 = vld [vmem:[%s8 + $0x18] sm:$0xff]
    %v1587 = vld [vmem:[%s8 + $0x20] sm:$0xff]
    %v1588 = vld [vmem:[%s8 + $0x28] sm:$0xff]
    %v1589 = vld [vmem:[%s8 + $0x30] sm:$0xff]
    %v1590 = vld [vmem:[%s8 + $0x38] sm:$0xff]
    %1591 = vmax.xlane.f32.xlu0 %v1551
    %v1592 = vpop.xlane.xlu0 %1591
    %1593 = vmax.xlane.f32.xlu0 %v1553
    %v1594 = vpop.xlane.xlu0 %1593
    %1595 = vmax.xlane.f32.xlu0 %v1555
    %v1596 = vpop.xlane.xlu0 %1595
    %1597 = vmax.xlane.f32.xlu0 %v1557
    %v1598 = vpop.xlane.xlu0 %1597
    %1599 = vmax.xlane.f32.xlu0 %v1559
    %v1600 = vpop.xlane.xlu0 %1599
    %1601 = vmax.xlane.f32.xlu0 %v1561
    %v1602 = vpop.xlane.xlu0 %1601
    %1603 = vmax.xlane.f32.xlu0 %v1563
    %v1604 = vpop.xlane.xlu0 %1603
    %1605 = vmax.xlane.f32.xlu0 %v1565
    %v1606 = vpop.xlane.xlu0 %1605
    %v1607 = vsub.f32 %v1551, %v1592
    %v1608 = vsub.f32 %v1553, %v1594
    %v1609 = vsub.f32 %v1555, %v1596
    %v1610 = vsub.f32 %v1557, %v1598
    %v1611 = vsub.f32 %v1559, %v1600
    %v1612 = vsub.f32 %v1561, %v1602
    %v1613 = vsub.f32 %v1563, %v1604
    %v1614 = vsub.f32 %v1565, %v1606
    %v1615 = vmul.f32 %v1607, 1.442695
    %v1616 = vpow.pop %v1615
    %v1617 = vmul.f32 %v1608, 1.442695
    %v1618 = vpow.pop %v1617
    %v1619 = vmul.f32 %v1609, 1.442695
    %v1620 = vpow.pop %v1619
    %v1621 = vmul.f32 %v1610, 1.442695
    %v1622 = vpow.pop %v1621
    %v1623 = vmul.f32 %v1611, 1.442695
    %v1624 = vpow.pop %v1623
    %v1625 = vmul.f32 %v1612, 1.442695
    %v1626 = vpow.pop %v1625
    %v1627 = vmul.f32 %v1613, 1.442695
    %v1628 = vpow.pop %v1627
    %v1629 = vmul.f32 %v1614, 1.442695
    %v1630 = vpow.pop %v1629
    %1631 = vadd.xlane.f32.xlu0 %v1616
    %v1632 = vpop.xlane.xlu0 %1631
    %1633 = vadd.xlane.f32.xlu0 %v1618
    %v1634 = vpop.xlane.xlu0 %1633
    %1635 = vadd.xlane.f32.xlu0 %v1620
    %v1636 = vpop.xlane.xlu0 %1635
    %1637 = vadd.xlane.f32.xlu0 %v1622
    %v1638 = vpop.xlane.xlu0 %1637
    %1639 = vadd.xlane.f32.xlu0 %v1624
    %v1640 = vpop.xlane.xlu0 %1639
    %1641 = vadd.xlane.f32.xlu0 %v1626
    %v1642 = vpop.xlane.xlu0 %1641
    %1643 = vadd.xlane.f32.xlu0 %v1628
    %v1644 = vpop.xlane.xlu0 %1643
    %1645 = vadd.xlane.f32.xlu0 %v1630
    %v1646 = vpop.xlane.xlu0 %1645
    %v1647 = vlog2.pop %v1632
    %v1648 = vmul.f32 %v1647, 0.6931472
    %v1649 = vlog2.pop %v1634
    %v1650 = vmul.f32 %v1649, 0.6931472
    %v1651 = vlog2.pop %v1636
    %v1652 = vmul.f32 %v1651, 0.6931472
    %v1653 = vlog2.pop %v1638
    %v1654 = vmul.f32 %v1653, 0.6931472
    %v1655 = vlog2.pop %v1640
    %v1656 = vmul.f32 %v1655, 0.6931472
    %v1657 = vlog2.pop %v1642
    %v1658 = vmul.f32 %v1657, 0.6931472
    %v1659 = vlog2.pop %v1644
    %v1660 = vmul.f32 %v1659, 0.6931472
    %v1661 = vlog2.pop %v1646
    %v1662 = vmul.f32 %v1661, 0.6931472
    %v1663 = vadd.f32 %v1592, %v1648
    %v1664 = vadd.f32 %v1594, %v1650
    %v1665 = vadd.f32 %v1596, %v1652
    %v1666 = vadd.f32 %v1598, %v1654
    %v1667 = vadd.f32 %v1600, %v1656
    %v1668 = vadd.f32 %v1602, %v1658
    %v1669 = vadd.f32 %v1604, %v1660
    %v1670 = vadd.f32 %v1606, %v1662
    %v1671 = vlaneseq
    %v1672 = vand.u32 %v1671, 127
    %1673 = vset.pattern.permute.xlu0 0
    %1674 = vperm.xlu0 %1673, %v1575
    %v1675 = vpop.permute.xlu0 %1674
    %1676 = vset.pattern.permute.xlu0 0
    %1677 = vperm.xlu0 %1676, %v1576
    %v1678 = vpop.permute.xlu0 %1677
    %1679 = vset.pattern.permute.xlu0 0
    %1680 = vperm.xlu0 %1679, %v1577
    %v1681 = vpop.permute.xlu0 %1680
    %1682 = vset.pattern.permute.xlu0 0
    %1683 = vperm.xlu0 %1682, %v1578
    %v1684 = vpop.permute.xlu0 %1683
    %1685 = vset.pattern.permute.xlu0 0
    %1686 = vperm.xlu0 %1685, %v1579
    %v1687 = vpop.permute.xlu0 %1686
    %1688 = vset.pattern.permute.xlu0 0
    %1689 = vperm.xlu0 %1688, %v1580
    %v1690 = vpop.permute.xlu0 %1689
    %1691 = vset.pattern.permute.xlu0 0
    %1692 = vperm.xlu0 %1691, %v1581
    %v1693 = vpop.permute.xlu0 %1692
    %1694 = vset.pattern.permute.xlu0 0
    %1695 = vperm.xlu0 %1694, %v1582
    %v1696 = vpop.permute.xlu0 %1695
    %vm1697 = vcmp.eq.s32.totalorder %v1672, %v1675
    %vm1698 = vcmp.eq.s32.totalorder %v1672, %v1678
    %vm1699 = vcmp.eq.s32.totalorder %v1672, %v1681
    %vm1700 = vcmp.eq.s32.totalorder %v1672, %v1684
    %vm1701 = vcmp.eq.s32.totalorder %v1672, %v1687
    %vm1702 = vcmp.eq.s32.totalorder %v1672, %v1690
    %vm1703 = vcmp.eq.s32.totalorder %v1672, %v1693
    %vm1704 = vcmp.eq.s32.totalorder %v1672, %v1696
    %v1705 = vsel %vm1697, %v1551, 0.0
    %v1706 = vsel %vm1698, %v1553, 0.0
    %v1707 = vsel %vm1699, %v1555, 0.0
    %v1708 = vsel %vm1700, %v1557, 0.0
    %v1709 = vsel %vm1701, %v1559, 0.0
    %v1710 = vsel %vm1702, %v1561, 0.0
    %v1711 = vsel %vm1703, %v1563, 0.0
    %v1712 = vsel %vm1704, %v1565, 0.0
    %1713 = vadd.xlane.f32.xlu0 %v1705
    %v1714 = vpop.xlane.xlu0 %1713
    %1715 = vadd.xlane.f32.xlu0 %v1706
    %v1716 = vpop.xlane.xlu0 %1715
    %1717 = vadd.xlane.f32.xlu0 %v1707
    %v1718 = vpop.xlane.xlu0 %1717
    %1719 = vadd.xlane.f32.xlu0 %v1708
    %v1720 = vpop.xlane.xlu0 %1719
    %1721 = vadd.xlane.f32.xlu0 %v1709
    %v1722 = vpop.xlane.xlu0 %1721
    %1723 = vadd.xlane.f32.xlu0 %v1710
    %v1724 = vpop.xlane.xlu0 %1723
    %1725 = vadd.xlane.f32.xlu0 %v1711
    %v1726 = vpop.xlane.xlu0 %1725
    %1727 = vadd.xlane.f32.xlu0 %v1712
    %v1728 = vpop.xlane.xlu0 %1727
    %v1729 = vsub.f32 %v1663, %v1714
    %v1730 = vsub.f32 %v1664, %v1716
    %v1731 = vsub.f32 %v1665, %v1718
    %v1732 = vsub.f32 %v1666, %v1720
    %v1733 = vsub.f32 %v1667, %v1722
    %v1734 = vsub.f32 %v1668, %v1724
    %v1735 = vsub.f32 %v1669, %v1726
    %v1736 = vsub.f32 %v1670, %v1728
    %v1737 = vmul.f32 %v1583, %v1729
    %v1738 = vmul.f32 %v1584, %v1730
    %v1739 = vmul.f32 %v1585, %v1731
    %v1740 = vmul.f32 %v1586, %v1732
    %v1741 = vmul.f32 %v1587, %v1733
    %v1742 = vmul.f32 %v1588, %v1734
    %v1743 = vmul.f32 %v1589, %v1735
    %v1744 = vmul.f32 %v1590, %v1736
    %vm1745 = vcmask 7168
    %v1746 = vsel %vm1745, %v1737, 0.0
    %v1747 = vsel %vm1745, %v1738, 0.0
    %v1748 = vadd.f32 %v1746, %v1747
    %v1749 = vsel %vm1745, %v1739, 0.0
    %v1750 = vadd.f32 %v1748, %v1749
    %v1751 = vsel %vm1745, %v1740, 0.0
    %v1752 = vadd.f32 %v1750, %v1751
    %v1753 = vsel %vm1745, %v1741, 0.0
    %v1754 = vadd.f32 %v1752, %v1753
    %v1755 = vsel %vm1745, %v1742, 0.0
    %v1756 = vadd.f32 %v1754, %v1755
    %v1757 = vsel %vm1745, %v1743, 0.0
    %v1758 = vadd.f32 %v1756, %v1757
    %v1759 = vsel %vm1745, %v1744, 0.0
    %v1760 = vadd.f32 %v1758, %v1759
    %v1761 = vrot.slane %v1760, 4
    %v1762 = vadd.f32 %v1760, %v1761
    %v1763 = vrot.slane %v1762, 2
    %v1764 = vadd.f32 %v1762, %v1763
    %v1765 = vrot.slane %v1764, 1
    %v1766 = vadd.f32 %v1764, %v1765
    %v1767 = vsel %vm1745, %v1583, 0.0
    %v1768 = vsel %vm1745, %v1584, 0.0
    %v1769 = vadd.f32 %v1767, %v1768
    %v1770 = vsel %vm1745, %v1585, 0.0
    %v1771 = vadd.f32 %v1769, %v1770
    %v1772 = vsel %vm1745, %v1586, 0.0
    %v1773 = vadd.f32 %v1771, %v1772
    %v1774 = vsel %vm1745, %v1587, 0.0
    %v1775 = vadd.f32 %v1773, %v1774
    %v1776 = vsel %vm1745, %v1588, 0.0
    %v1777 = vadd.f32 %v1775, %v1776
    %v1778 = vsel %vm1745, %v1589, 0.0
    %v1779 = vadd.f32 %v1777, %v1778
    %v1780 = vsel %vm1745, %v1590, 0.0
    %v1781 = vadd.f32 %v1779, %v1780
    %v1782 = vrot.slane %v1781, 4
    %v1783 = vadd.f32 %v1781, %v1782
    %v1784 = vrot.slane %v1783, 2
    %v1785 = vadd.f32 %v1783, %v1784
    %v1786 = vrot.slane %v1785, 1
    %v1787 = vadd.f32 %v1785, %v1786
    %v1788 = vld [vmem:[%s9] sm:$0xff]
    %v1789 = vld [vmem:[%s9 + $0x8] sm:$0xff]
    %v1790 = vld [vmem:[%s9 + $0x10] sm:$0xff]
    %v1791 = vld [vmem:[%s9 + $0x18] sm:$0xff]
    %v1792 = vld [vmem:[%s9 + $0x20] sm:$0xff]
    %v1793 = vld [vmem:[%s9 + $0x28] sm:$0xff]
    %v1794 = vld [vmem:[%s9 + $0x30] sm:$0xff]
    %v1795 = vld [vmem:[%s9 + $0x38] sm:$0xff]
    %v1796 = vld [vmem:[%s10] sm:$0xff]
    %v1797 = vld [vmem:[%s10 + $0x8] sm:$0xff]
    %v1798 = vld [vmem:[%s10 + $0x10] sm:$0xff]
    %v1799 = vld [vmem:[%s10 + $0x18] sm:$0xff]
    %v1800 = vld [vmem:[%s10 + $0x20] sm:$0xff]
    %v1801 = vld [vmem:[%s10 + $0x28] sm:$0xff]
    %v1802 = vld [vmem:[%s10 + $0x30] sm:$0xff]
    %v1803 = vld [vmem:[%s10 + $0x38] sm:$0xff]
    %1804 = vmax.xlane.f32.xlu0 %v1552
    %v1805 = vpop.xlane.xlu0 %1804
    %1806 = vmax.xlane.f32.xlu0 %v1554
    %v1807 = vpop.xlane.xlu0 %1806
    %1808 = vmax.xlane.f32.xlu0 %v1556
    %v1809 = vpop.xlane.xlu0 %1808
    %1810 = vmax.xlane.f32.xlu0 %v1558
    %v1811 = vpop.xlane.xlu0 %1810
    %1812 = vmax.xlane.f32.xlu0 %v1560
    %v1813 = vpop.xlane.xlu0 %1812
    %1814 = vmax.xlane.f32.xlu0 %v1562
    %v1815 = vpop.xlane.xlu0 %1814
    %1816 = vmax.xlane.f32.xlu0 %v1564
    %v1817 = vpop.xlane.xlu0 %1816
    %1818 = vmax.xlane.f32.xlu0 %v1566
    %v1819 = vpop.xlane.xlu0 %1818
    %v1820 = vsub.f32 %v1552, %v1805
    %v1821 = vsub.f32 %v1554, %v1807
    %v1822 = vsub.f32 %v1556, %v1809
    %v1823 = vsub.f32 %v1558, %v1811
    %v1824 = vsub.f32 %v1560, %v1813
    %v1825 = vsub.f32 %v1562, %v1815
    %v1826 = vsub.f32 %v1564, %v1817
    %v1827 = vsub.f32 %v1566, %v1819
    %v1828 = vmul.f32 %v1820, 1.442695
    %v1829 = vpow.pop %v1828
    %v1830 = vmul.f32 %v1821, 1.442695
    %v1831 = vpow.pop %v1830
    %v1832 = vmul.f32 %v1822, 1.442695
    %v1833 = vpow.pop %v1832
    %v1834 = vmul.f32 %v1823, 1.442695
    %v1835 = vpow.pop %v1834
    %v1836 = vmul.f32 %v1824, 1.442695
    %v1837 = vpow.pop %v1836
    %v1838 = vmul.f32 %v1825, 1.442695
    %v1839 = vpow.pop %v1838
    %v1840 = vmul.f32 %v1826, 1.442695
    %v1841 = vpow.pop %v1840
    %v1842 = vmul.f32 %v1827, 1.442695
    %v1843 = vpow.pop %v1842
    %1844 = vadd.xlane.f32.xlu0 %v1829
    %v1845 = vpop.xlane.xlu0 %1844
    %1846 = vadd.xlane.f32.xlu0 %v1831
    %v1847 = vpop.xlane.xlu0 %1846
    %1848 = vadd.xlane.f32.xlu0 %v1833
    %v1849 = vpop.xlane.xlu0 %1848
    %1850 = vadd.xlane.f32.xlu0 %v1835
    %v1851 = vpop.xlane.xlu0 %1850
    %1852 = vadd.xlane.f32.xlu0 %v1837
    %v1853 = vpop.xlane.xlu0 %1852
    %1854 = vadd.xlane.f32.xlu0 %v1839
    %v1855 = vpop.xlane.xlu0 %1854
    %1856 = vadd.xlane.f32.xlu0 %v1841
    %v1857 = vpop.xlane.xlu0 %1856
    %1858 = vadd.xlane.f32.xlu0 %v1843
    %v1859 = vpop.xlane.xlu0 %1858
    %v1860 = vlog2.pop %v1845
    %v1861 = vmul.f32 %v1860, 0.6931472
    %v1862 = vlog2.pop %v1847
    %v1863 = vmul.f32 %v1862, 0.6931472
    %v1864 = vlog2.pop %v1849
    %v1865 = vmul.f32 %v1864, 0.6931472
    %v1866 = vlog2.pop %v1851
    %v1867 = vmul.f32 %v1866, 0.6931472
    %v1868 = vlog2.pop %v1853
    %v1869 = vmul.f32 %v1868, 0.6931472
    %v1870 = vlog2.pop %v1855
    %v1871 = vmul.f32 %v1870, 0.6931472
    %v1872 = vlog2.pop %v1857
    %v1873 = vmul.f32 %v1872, 0.6931472
    %v1874 = vlog2.pop %v1859
    %v1875 = vmul.f32 %v1874, 0.6931472
    %v1876 = vadd.f32 %v1805, %v1861
    %v1877 = vadd.f32 %v1807, %v1863
    %v1878 = vadd.f32 %v1809, %v1865
    %v1879 = vadd.f32 %v1811, %v1867
    %v1880 = vadd.f32 %v1813, %v1869
    %v1881 = vadd.f32 %v1815, %v1871
    %v1882 = vadd.f32 %v1817, %v1873
    %v1883 = vadd.f32 %v1819, %v1875
    %1884 = vset.pattern.permute.xlu0 0
    %1885 = vperm.xlu0 %1884, %v1788
    %v1886 = vpop.permute.xlu0 %1885
    %1887 = vset.pattern.permute.xlu0 0
    %1888 = vperm.xlu0 %1887, %v1789
    %v1889 = vpop.permute.xlu0 %1888
    %1890 = vset.pattern.permute.xlu0 0
    %1891 = vperm.xlu0 %1890, %v1790
    %v1892 = vpop.permute.xlu0 %1891
    %1893 = vset.pattern.permute.xlu0 0
    %1894 = vperm.xlu0 %1893, %v1791
    %v1895 = vpop.permute.xlu0 %1894
    %1896 = vset.pattern.permute.xlu0 0
    %1897 = vperm.xlu0 %1896, %v1792
    %v1898 = vpop.permute.xlu0 %1897
    %1899 = vset.pattern.permute.xlu0 0
    %1900 = vperm.xlu0 %1899, %v1793
    %v1901 = vpop.permute.xlu0 %1900
    %1902 = vset.pattern.permute.xlu0 0
    %1903 = vperm.xlu0 %1902, %v1794
    %v1904 = vpop.permute.xlu0 %1903
    %1905 = vset.pattern.permute.xlu0 0
    %1906 = vperm.xlu0 %1905, %v1795
    %v1907 = vpop.permute.xlu0 %1906
    %vm1908 = vcmp.eq.s32.totalorder %v1672, %v1886
    %vm1909 = vcmp.eq.s32.totalorder %v1672, %v1889
    %vm1910 = vcmp.eq.s32.totalorder %v1672, %v1892
    %vm1911 = vcmp.eq.s32.totalorder %v1672, %v1895
    %vm1912 = vcmp.eq.s32.totalorder %v1672, %v1898
    %vm1913 = vcmp.eq.s32.totalorder %v1672, %v1901
    %vm1914 = vcmp.eq.s32.totalorder %v1672, %v1904
    %vm1915 = vcmp.eq.s32.totalorder %v1672, %v1907
    %v1916 = vsel %vm1908, %v1552, 0.0
    %v1917 = vsel %vm1909, %v1554, 0.0
    %v1918 = vsel %vm1910, %v1556, 0.0
    %v1919 = vsel %vm1911, %v1558, 0.0
    %v1920 = vsel %vm1912, %v1560, 0.0
    %v1921 = vsel %vm1913, %v1562, 0.0
    %v1922 = vsel %vm1914, %v1564, 0.0
    %v1923 = vsel %vm1915, %v1566, 0.0
    %1924 = vadd.xlane.f32.xlu0 %v1916
    %v1925 = vpop.xlane.xlu0 %1924
    %1926 = vadd.xlane.f32.xlu0 %v1917
    %v1927 = vpop.xlane.xlu0 %1926
    %1928 = vadd.xlane.f32.xlu0 %v1918
    %v1929 = vpop.xlane.xlu0 %1928
    %1930 = vadd.xlane.f32.xlu0 %v1919
    %v1931 = vpop.xlane.xlu0 %1930
    %1932 = vadd.xlane.f32.xlu0 %v1920
    %v1933 = vpop.xlane.xlu0 %1932
    %1934 = vadd.xlane.f32.xlu0 %v1921
    %v1935 = vpop.xlane.xlu0 %1934
    %1936 = vadd.xlane.f32.xlu0 %v1922
    %v1937 = vpop.xlane.xlu0 %1936
    %1938 = vadd.xlane.f32.xlu0 %v1923
    %v1939 = vpop.xlane.xlu0 %1938
    %v1940 = vsub.f32 %v1876, %v1925
    %v1941 = vsub.f32 %v1877, %v1927
    %v1942 = vsub.f32 %v1878, %v1929
    %v1943 = vsub.f32 %v1879, %v1931
    %v1944 = vsub.f32 %v1880, %v1933
    %v1945 = vsub.f32 %v1881, %v1935
    %v1946 = vsub.f32 %v1882, %v1937
    %v1947 = vsub.f32 %v1883, %v1939
    %v1948 = vmul.f32 %v1796, %v1940
    %v1949 = vmul.f32 %v1797, %v1941
    %v1950 = vmul.f32 %v1798, %v1942
    %v1951 = vmul.f32 %v1799, %v1943
    %v1952 = vmul.f32 %v1800, %v1944
    %v1953 = vmul.f32 %v1801, %v1945
    %v1954 = vmul.f32 %v1802, %v1946
    %v1955 = vmul.f32 %v1803, %v1947
    %v1956 = vsel %vm1745, %v1948, 0.0
    %v1957 = vsel %vm1745, %v1949, 0.0
    %v1958 = vadd.f32 %v1956, %v1957
    %v1959 = vsel %vm1745, %v1950, 0.0
    %v1960 = vadd.f32 %v1958, %v1959
    %v1961 = vsel %vm1745, %v1951, 0.0
    %v1962 = vadd.f32 %v1960, %v1961
    %v1963 = vsel %vm1745, %v1952, 0.0
    %v1964 = vadd.f32 %v1962, %v1963
    %v1965 = vsel %vm1745, %v1953, 0.0
    %v1966 = vadd.f32 %v1964, %v1965
    %v1967 = vsel %vm1745, %v1954, 0.0
    %v1968 = vadd.f32 %v1966, %v1967
    %v1969 = vsel %vm1745, %v1955, 0.0
    %v1970 = vadd.f32 %v1968, %v1969
    %v1971 = vrot.slane %v1970, 4
    %v1972 = vadd.f32 %v1970, %v1971
    %v1973 = vrot.slane %v1972, 2
    %v1974 = vadd.f32 %v1972, %v1973
    %v1975 = vrot.slane %v1974, 1
    %v1976 = vadd.f32 %v1974, %v1975
    %v1977 = vsel %vm1745, %v1796, 0.0
    %v1978 = vsel %vm1745, %v1797, 0.0
    %v1979 = vadd.f32 %v1977, %v1978
    %v1980 = vsel %vm1745, %v1798, 0.0
    %v1981 = vadd.f32 %v1979, %v1980
    %v1982 = vsel %vm1745, %v1799, 0.0
    %v1983 = vadd.f32 %v1981, %v1982
    %v1984 = vsel %vm1745, %v1800, 0.0
    %v1985 = vadd.f32 %v1983, %v1984
    %v1986 = vsel %vm1745, %v1801, 0.0
    %v1987 = vadd.f32 %v1985, %v1986
    %v1988 = vsel %vm1745, %v1802, 0.0
    %v1989 = vadd.f32 %v1987, %v1988
    %v1990 = vsel %vm1745, %v1803, 0.0
    %v1991 = vadd.f32 %v1989, %v1990
    %v1992 = vrot.slane %v1991, 4
    %v1993 = vadd.f32 %v1991, %v1992
    %v1994 = vrot.slane %v1993, 2
    %v1995 = vadd.f32 %v1993, %v1994
    %v1996 = vrot.slane %v1995, 1
    %v1997 = vadd.f32 %v1995, %v1996
    %v1998 = vrcp.pop %v1787
    %v1999 = vmul.f32 %v1766, %v1998
    %v2000 = vrcp.pop %v1997
    %v2001 = vmul.f32 %v1976, %v2000
    %v2002 = vadd.f32 %v1999, %v2001
    %vm2003 = vcmask 0
    %2004 = vst.msk [vmem:[#allocation12] sm:$0x1] %vm2003, %v2002
    // Predicated region
    $region58: #{tpu_custom_call.1} parent=1 // pred_check
      _
    $region59: #{tpu_custom_call.1} parent=1 // pred_check_branch
      %2006 = sbr.rel (0) target = $region61
    $region60: #{tpu_custom_call.1} parent=1 // pred_region
      %s2008 = ssub.s32 1024, 1024
      %2009 = vsyncadd [#allocation7], %s2008
      %s2010 = sshll.u32 [#allocation11], 4
      %s2011 = int_to_ptr.vmem [resolvable:$true] %s2010
      %2016 = dma.vmem_to_hbm [thread:$0]  %s2011, 1024, %s11, [#allocation7], 128, 128, 8
    $region61: #{tpu_custom_call.1} parent=1 // pred_fallthru
      _
    // Predicated region
    $region62: #{tpu_custom_call.1} parent=1 // pred_check
      _
    $region63: #{tpu_custom_call.1} parent=1 // pred_check_branch
      %2018 = sbr.rel (0) target = $region65
    $region64: #{tpu_custom_call.1} parent=1 // pred_region
      %s2020 = ssub.s32 16, 16
      %2021 = vsyncadd [#allocation13], %s2020
      %s2023 = sshll.u32 [#allocation12], 4
      %s2024 = int_to_ptr.vmem [resolvable:$true] %s2023
      %2026 = dma.vmem_to_hbm [thread:$0]  %s2024, 16, %s12, [#allocation13]
    $region65: #{tpu_custom_call.1} parent=1 // pred_fallthru
      _
    // Predicated region
    $region66: #{tpu_custom_call.1} parent=1 // pred_check
      _
    $region67: #{tpu_custom_call.1} parent=1 // pred_check_branch
      %2028 = sbr.rel (0) target = $region69
    $region68: #{tpu_custom_call.1} parent=1 // pred_region
      %2029 = dma.done [#allocation7], 1024
    $region69: #{tpu_custom_call.1} parent=1 // pred_fallthru
      _
    // Predicated region
    $region70: #{tpu_custom_call.1} parent=1 // pred_check
      _
    $region71: #{tpu_custom_call.1} parent=1 // pred_check_branch
      %2031 = sbr.rel (0) target = $region73
    $region72: #{tpu_custom_call.1} parent=1 // pred_region
      %2032 = dma.done [#allocation13], 16
    $region73: #{tpu_custom_call.1} parent=1 // pred_fallthru
      _
    %2033 = vsyncpa [#allocation6], 1
    %2034 = vsyncpa [#allocation9], 1
    %2035 = vsyncpa [#allocation7], 1
    %2036 = vsyncpa [#allocation13], 1

</llo_original>
